<compile_context>
chip_gen: v5e
topology: v5e:2x2
jax: 0.10.0
libtpu: 0.0.40
codegen_flags: <defaults>
</compile_context>

<pallas_src>
import jax
import jax.numpy as jnp
from jax.experimental import pallas as pl
from jax.experimental.pallas import tpu as pltpu

LANE = 128       # lane width: pad channel dims to this for dense stores
NODE_PAD = 128   # pad node count to this (MXU-/lane-aligned A, see review)


def _round_up(x, m):
    return ((x + m - 1) // m) * m


# ---------------------------------------------------------------------------
# Fused Pallas kernel: 3x (SAGEConv + ReLU) + Linear, all in VMEM
# ---------------------------------------------------------------------------
def _graphsage_fused_kernel(a_ref, x_ref,
                            wl1_ref, wr1_ref, b1_ref,
                            wl2_ref, wr2_ref, b2_ref,
                            wl3_ref, wr3_ref, b3_ref,
                            wf_ref, bf_ref,
                            o_ref):
    # a_ref   : (Np, Np)    bf16 row-normalized adjacency (mean aggregation)
    # x_ref   : (Np, Cp)    bf16 node features, channel-padded
    # wlK/wrK : (Cp, Hp)    bf16 lin_l / lin_r weights for SAGEConv layer K
    # bK      : (1, Hp)     f32 bias (lin_l bias, PyG convention)
    # wf/bf   : final Linear (Hp, Coutp) bf16 / (1, Coutp) f32
    # o_ref   : (Np, Coutp) f32, lane-dense output
    a = a_ref[...]  # load A once, reuse for all three conv layers

    def sage_layer(h, wl_ref, wr_ref, b_ref):
        # Neighbor mean: (Np, Np) @ (Np, Cp) on the MXU, f32 accumulation.
        agg = jnp.dot(a, h, preferred_element_type=jnp.float32)
        # lin_l(agg) + lin_r(h): two dots accumulated in f32 (no concat temp).
        out = jnp.dot(agg.astype(jnp.bfloat16), wl_ref[...],
                      preferred_element_type=jnp.float32)
        out = out + jnp.dot(h, wr_ref[...],
                            preferred_element_type=jnp.float32)
        out = jnp.maximum(out + b_ref[...], 0.0)          # bias + ReLU
        return out.astype(jnp.bfloat16)

    h = sage_layer(x_ref[...], wl1_ref, wr1_ref, b1_ref)
    # dropout(p=0.5, training=False) == identity
    h = sage_layer(h, wl2_ref, wr2_ref, b2_ref)
    h = sage_layer(h, wl3_ref, wr3_ref, b3_ref)

    out = jnp.dot(h, wf_ref[...], preferred_element_type=jnp.float32)
    o_ref[...] = (out + bf_ref[...]).astype(o_ref.dtype)


def _full_spec(shape):
    return pl.BlockSpec(shape, lambda: (0,) * len(shape))


def graphsage_forward(prepared_params, x_padded, a_norm_bf16):
    """Fused forward pass on pre-padded / pre-cast inputs.

    Returns the padded (Np, Coutp) f32 output; caller slices real rows/cols.
    """
    (wl1, wr1, b1), (wl2, wr2, b2), (wl3, wr3, b3), (wf, bf) = prepared_params
    n_pad = x_padded.shape[0]
    cout_p = wf.shape[1]

    operands = (a_norm_bf16, x_padded,
                wl1, wr1, b1, wl2, wr2, b2, wl3, wr3, b3, wf, bf)

    # VMEM budget: all operands + output + activation temps, with headroom.
    out_bytes = n_pad * cout_p * 4
    operand_bytes = sum(int(op.size) * op.dtype.itemsize for op in operands)
    vmem_limit = min(int(2 * (operand_bytes + out_bytes)) + (8 << 20), 100 << 20)

    return pl.pallas_call(
        _graphsage_fused_kernel,
        out_shape=jax.ShapeDtypeStruct((n_pad, cout_p), jnp.float32),
        in_specs=[_full_spec(op.shape) for op in operands],
        out_specs=_full_spec((n_pad, cout_p)),
        compiler_params=pltpu.CompilerParams(vmem_limit_bytes=vmem_limit),
    )(*operands)


# ---------------------------------------------------------------------------
# Graph-static preprocessing (hoisted out of the forward hot path)
# ---------------------------------------------------------------------------
def build_mean_adjacency(edge_index, num_nodes):
    """Dense row-normalized adjacency for mean aggregation (PyG convention:
    edge_index[0]=source, edge_index[1]=target; messages flow src -> dst)."""
    src = edge_index[0]
    dst = edge_index[1]
    a = jnp.zeros((num_nodes, num_nodes), jnp.float32).at[dst, src].add(1.0)
    deg = a.sum(axis=1, keepdims=True)
    return a / jnp.maximum(deg, 1.0)   # isolated nodes -> zero aggregation


def prepare_inputs(x, edge_index, num_nodes, in_channels):
    """Pad nodes/channels to MXU-aligned sizes, build A_norm once, cast to bf16."""
    n_pad = _round_up(num_nodes, NODE_PAD)
    cin_p = _round_up(in_channels, LANE)

    a_norm = build_mean_adjacency(edge_index, num_nodes)
    a_pad = jnp.zeros((n_pad, n_pad), jnp.float32)
    a_pad = a_pad.at[:num_nodes, :num_nodes].set(a_norm).astype(jnp.bfloat16)

    x_pad = jnp.zeros((n_pad, cin_p), jnp.float32)
    x_pad = x_pad.at[:num_nodes, :in_channels].set(x).astype(jnp.bfloat16)
    return a_pad, x_pad


def prepare_params(params, in_channels, hidden_channels, out_channels):
    """Zero-pad channel dims to lane multiples, cast weights to bf16
    (biases stay f32 and are added post-accumulation)."""
    cin_p = _round_up(in_channels, LANE)
    h_p = _round_up(hidden_channels, LANE)
    cout_p = _round_up(out_channels, LANE)

    def pad_w(w, cin, cin_pad, h, h_pad):
        wp = jnp.zeros((cin_pad, h_pad), jnp.float32)
        return wp.at[:cin, :h].set(w).astype(jnp.bfloat16)

    def pad_b(b, h, h_pad):
        return jnp.zeros((1, h_pad), jnp.float32).at[:, :h].set(b)

    def pack_conv(wl, wr, b, cin, cin_pad, h, h_pad):
        return (pad_w(wl, cin, cin_pad, h, h_pad),
                pad_w(wr, cin, cin_pad, h, h_pad),
                pad_b(b, h, h_pad))

    wl1, wr1, b1 = params["conv1"]
    wl2, wr2, b2 = params["conv2"]
    wl3, wr3, b3 = params["conv3"]
    wf, bf = params["fc"]

    p1 = pack_conv(wl1, wr1, b1, in_channels, cin_p, hidden_channels, h_p)
    p2 = pack_conv(wl2, wr2, b2, hidden_channels, h_p, hidden_channels, h_p)
    p3 = pack_conv(wl3, wr3, b3, hidden_channels, h_p, hidden_channels, h_p)

    wf_p = pad_w(wf, hidden_channels, h_p, out_channels, cout_p)
    bf_p = pad_b(bf, out_channels, cout_p)
    return (p1, p2, p3, (wf_p, bf_p))


# ---------------------------------------------------------------------------
# Parameter init (matches module shapes; deterministic; PyTorch-like init)
# ---------------------------------------------------------------------------
def init_params(key, in_channels, hidden_channels, out_channels):
    def uniform(k, shape, fan_in):
        scale = 1.0 / jnp.sqrt(jnp.float32(fan_in))
        return jax.random.uniform(k, shape, jnp.float32, -scale, scale)

    ks = jax.random.split(key, 11)
    return {
        "conv1": (
            uniform(ks[0], (in_channels, hidden_channels), in_channels),   # lin_l W
            uniform(ks[1], (in_channels, hidden_channels), in_channels),   # lin_r W
            uniform(ks[2], (1, hidden_channels), in_channels),             # lin_l b
        ),
        "conv2": (
            uniform(ks[3], (hidden_channels, hidden_channels), hidden_channels),
            uniform(ks[4], (hidden_channels, hidden_channels), hidden_channels),
            uniform(ks[5], (1, hidden_channels), hidden_channels),
        ),
        "conv3": (
            uniform(ks[6], (hidden_channels, hidden_channels), hidden_channels),
            uniform(ks[7], (hidden_channels, hidden_channels), hidden_channels),
            uniform(ks[8], (1, hidden_channels), hidden_channels),
        ),
        "fc": (
            uniform(ks[9], (hidden_channels, out_channels), hidden_channels),  # W
            uniform(ks[10], (1, out_channels), hidden_channels),               # b
        ),
    }


if __name__ == "__main__":
    IN_CHANNELS = 8
    HIDDEN_CHANNELS = 32
    OUT_CHANNELS = 4
    NUM_NODES = 16
    NUM_EDGES = 48

    key = jax.random.PRNGKey(0)
    k_x, k_src, k_dst, k_params = jax.random.split(key, 4)

    x = jax.random.normal(k_x, (NUM_NODES, IN_CHANNELS), jnp.float32)
    src = jax.random.randint(k_src, (NUM_EDGES,), 0, NUM_NODES, jnp.int32)
    dst = jax.random.randint(k_dst, (NUM_EDGES,), 0, NUM_NODES, jnp.int32)
    edge_index = jnp.stack([src, dst], axis=0)  # (2, E)

    params = init_params(k_params, IN_CHANNELS, HIDDEN_CHANNELS, OUT_CHANNELS)

    # Graph-static preprocessing: done once per graph, not per forward call.
    a_bf16, x_pad = prepare_inputs(x, edge_index, NUM_NODES, IN_CHANNELS)
    prepared = prepare_params(params, IN_CHANNELS, HIDDEN_CHANNELS, OUT_CHANNELS)

    out_padded = jax.jit(graphsage_forward)(prepared, x_pad, a_bf16)
    out = out_padded[:NUM_NODES, :OUT_CHANNELS]   # drop node/channel padding
    out = jax.block_until_ready(out)

    assert out.shape == (NUM_NODES, OUT_CHANNELS), out.shape
    assert out.dtype == jnp.float32
    assert bool(jnp.all(jnp.isfinite(out)))
    print("KERNEL_OK")
</pallas_src>

<mosaic_0001>
module attributes {stable_mosaic.version = 11 : i64} {
  func.func @_graphsage_fused_kernel(%arg0: memref<128x128xbf16, #tpu.memory_space<vmem>>, %arg1: memref<128x128xbf16, #tpu.memory_space<vmem>>, %arg2: memref<128x128xbf16, #tpu.memory_space<vmem>>, %arg3: memref<128x128xbf16, #tpu.memory_space<vmem>>, %arg4: memref<1x128xf32, #tpu.memory_space<vmem>>, %arg5: memref<128x128xbf16, #tpu.memory_space<vmem>>, %arg6: memref<128x128xbf16, #tpu.memory_space<vmem>>, %arg7: memref<1x128xf32, #tpu.memory_space<vmem>>, %arg8: memref<128x128xbf16, #tpu.memory_space<vmem>>, %arg9: memref<128x128xbf16, #tpu.memory_space<vmem>>, %arg10: memref<1x128xf32, #tpu.memory_space<vmem>>, %arg11: memref<128x128xbf16, #tpu.memory_space<vmem>>, %arg12: memref<1x128xf32, #tpu.memory_space<vmem>>, %arg13: memref<128x128xf32, #tpu.memory_space<vmem>>) attributes {dimension_semantics = [], scalar_prefetch = 0 : i64, scratch_operands = 0 : i64, tpu.core_type = #tpu.core_type<tc>} {
    %c0 = arith.constant 0 : index
    %c0_0 = arith.constant 0 : index
    %0 = vector.load %arg0[%c0, %c0_0] : memref<128x128xbf16, #tpu.memory_space<vmem>>, vector<128x128xbf16>
    %c0_1 = arith.constant 0 : index
    %c0_2 = arith.constant 0 : index
    %1 = vector.load %arg1[%c0_1, %c0_2] : memref<128x128xbf16, #tpu.memory_space<vmem>>, vector<128x128xbf16>
    %cst = arith.constant dense<0.000000e+00> : vector<128x128xf32>
    %2 = tpu.matmul %0, %1, %cst {dimension_numbers = #tpu.dot_dimension_numbers<[1], [0], [0], [1], [0, 0, 1, 1], [], []>} : vector<128x128xbf16>, vector<128x128xbf16>, vector<128x128xf32> -> vector<128x128xf32>
    %3 = arith.truncf %2 : vector<128x128xf32> to vector<128x128xbf16>
    %c0_3 = arith.constant 0 : index
    %c0_4 = arith.constant 0 : index
    %4 = vector.load %arg2[%c0_3, %c0_4] : memref<128x128xbf16, #tpu.memory_space<vmem>>, vector<128x128xbf16>
    %cst_5 = arith.constant dense<0.000000e+00> : vector<128x128xf32>
    %5 = tpu.matmul %3, %4, %cst_5 {dimension_numbers = #tpu.dot_dimension_numbers<[1], [0], [0], [1], [0, 0, 1, 1], [], []>} : vector<128x128xbf16>, vector<128x128xbf16>, vector<128x128xf32> -> vector<128x128xf32>
    %c0_6 = arith.constant 0 : index
    %c0_7 = arith.constant 0 : index
    %6 = vector.load %arg3[%c0_6, %c0_7] : memref<128x128xbf16, #tpu.memory_space<vmem>>, vector<128x128xbf16>
    %cst_8 = arith.constant dense<0.000000e+00> : vector<128x128xf32>
    %7 = tpu.matmul %1, %6, %cst_8 {dimension_numbers = #tpu.dot_dimension_numbers<[1], [0], [0], [1], [0, 0, 1, 1], [], []>} : vector<128x128xbf16>, vector<128x128xbf16>, vector<128x128xf32> -> vector<128x128xf32>
    %8 = arith.addf %5, %7 : vector<128x128xf32>
    %c0_9 = arith.constant 0 : index
    %c0_10 = arith.constant 0 : index
    %9 = vector.load %arg4[%c0_9, %c0_10] : memref<1x128xf32, #tpu.memory_space<vmem>>, vector<1x128xf32>
    %10 = vector.broadcast %9 : vector<1x128xf32> to vector<128x128xf32>
    %11 = arith.addf %8, %10 : vector<128x128xf32>
    %cst_11 = arith.constant 0.000000e+00 : f32
    %12 = vector.broadcast %cst_11 : f32 to vector<128x128xf32>
    %13 = arith.maximumf %11, %12 : vector<128x128xf32>
    %14 = arith.truncf %13 : vector<128x128xf32> to vector<128x128xbf16>
    %cst_12 = arith.constant dense<0.000000e+00> : vector<128x128xf32>
    %15 = tpu.matmul %0, %14, %cst_12 {dimension_numbers = #tpu.dot_dimension_numbers<[1], [0], [0], [1], [0, 0, 1, 1], [], []>} : vector<128x128xbf16>, vector<128x128xbf16>, vector<128x128xf32> -> vector<128x128xf32>
    %16 = arith.truncf %15 : vector<128x128xf32> to vector<128x128xbf16>
    %c0_13 = arith.constant 0 : index
    %c0_14 = arith.constant 0 : index
    %17 = vector.load %arg5[%c0_13, %c0_14] : memref<128x128xbf16, #tpu.memory_space<vmem>>, vector<128x128xbf16>
    %cst_15 = arith.constant dense<0.000000e+00> : vector<128x128xf32>
    %18 = tpu.matmul %16, %17, %cst_15 {dimension_numbers = #tpu.dot_dimension_numbers<[1], [0], [0], [1], [0, 0, 1, 1], [], []>} : vector<128x128xbf16>, vector<128x128xbf16>, vector<128x128xf32> -> vector<128x128xf32>
    %c0_16 = arith.constant 0 : index
    %c0_17 = arith.constant 0 : index
    %19 = vector.load %arg6[%c0_16, %c0_17] : memref<128x128xbf16, #tpu.memory_space<vmem>>, vector<128x128xbf16>
    %cst_18 = arith.constant dense<0.000000e+00> : vector<128x128xf32>
    %20 = tpu.matmul %14, %19, %cst_18 {dimension_numbers = #tpu.dot_dimension_numbers<[1], [0], [0], [1], [0, 0, 1, 1], [], []>} : vector<128x128xbf16>, vector<128x128xbf16>, vector<128x128xf32> -> vector<128x128xf32>
    %21 = arith.addf %18, %20 : vector<128x128xf32>
    %c0_19 = arith.constant 0 : index
    %c0_20 = arith.constant 0 : index
    %22 = vector.load %arg7[%c0_19, %c0_20] : memref<1x128xf32, #tpu.memory_space<vmem>>, vector<1x128xf32>
    %23 = vector.broadcast %22 : vector<1x128xf32> to vector<128x128xf32>
    %24 = arith.addf %21, %23 : vector<128x128xf32>
    %cst_21 = arith.constant 0.000000e+00 : f32
    %25 = vector.broadcast %cst_21 : f32 to vector<128x128xf32>
    %26 = arith.maximumf %24, %25 : vector<128x128xf32>
    %27 = arith.truncf %26 : vector<128x128xf32> to vector<128x128xbf16>
    %cst_22 = arith.constant dense<0.000000e+00> : vector<128x128xf32>
    %28 = tpu.matmul %0, %27, %cst_22 {dimension_numbers = #tpu.dot_dimension_numbers<[1], [0], [0], [1], [0, 0, 1, 1], [], []>} : vector<128x128xbf16>, vector<128x128xbf16>, vector<128x128xf32> -> vector<128x128xf32>
    %29 = arith.truncf %28 : vector<128x128xf32> to vector<128x128xbf16>
    %c0_23 = arith.constant 0 : index
    %c0_24 = arith.constant 0 : index
    %30 = vector.load %arg8[%c0_23, %c0_24] : memref<128x128xbf16, #tpu.memory_space<vmem>>, vector<128x128xbf16>
    %cst_25 = arith.constant dense<0.000000e+00> : vector<128x128xf32>
    %31 = tpu.matmul %29, %30, %cst_25 {dimension_numbers = #tpu.dot_dimension_numbers<[1], [0], [0], [1], [0, 0, 1, 1], [], []>} : vector<128x128xbf16>, vector<128x128xbf16>, vector<128x128xf32> -> vector<128x128xf32>
    %c0_26 = arith.constant 0 : index
    %c0_27 = arith.constant 0 : index
    %32 = vector.load %arg9[%c0_26, %c0_27] : memref<128x128xbf16, #tpu.memory_space<vmem>>, vector<128x128xbf16>
    %cst_28 = arith.constant dense<0.000000e+00> : vector<128x128xf32>
    %33 = tpu.matmul %27, %32, %cst_28 {dimension_numbers = #tpu.dot_dimension_numbers<[1], [0], [0], [1], [0, 0, 1, 1], [], []>} : vector<128x128xbf16>, vector<128x128xbf16>, vector<128x128xf32> -> vector<128x128xf32>
    %34 = arith.addf %31, %33 : vector<128x128xf32>
    %c0_29 = arith.constant 0 : index
    %c0_30 = arith.constant 0 : index
    %35 = vector.load %arg10[%c0_29, %c0_30] : memref<1x128xf32, #tpu.memory_space<vmem>>, vector<1x128xf32>
    %36 = vector.broadcast %35 : vector<1x128xf32> to vector<128x128xf32>
    %37 = arith.addf %34, %36 : vector<128x128xf32>
    %cst_31 = arith.constant 0.000000e+00 : f32
    %38 = vector.broadcast %cst_31 : f32 to vector<128x128xf32>
    %39 = arith.maximumf %37, %38 : vector<128x128xf32>
    %40 = arith.truncf %39 : vector<128x128xf32> to vector<128x128xbf16>
    %c0_32 = arith.constant 0 : index
    %c0_33 = arith.constant 0 : index
    %41 = vector.load %arg11[%c0_32, %c0_33] : memref<128x128xbf16, #tpu.memory_space<vmem>>, vector<128x128xbf16>
    %cst_34 = arith.constant dense<0.000000e+00> : vector<128x128xf32>
    %42 = tpu.matmul %40, %41, %cst_34 {dimension_numbers = #tpu.dot_dimension_numbers<[1], [0], [0], [1], [0, 0, 1, 1], [], []>} : vector<128x128xbf16>, vector<128x128xbf16>, vector<128x128xf32> -> vector<128x128xf32>
    %c0_35 = arith.constant 0 : index
    %c0_36 = arith.constant 0 : index
    %43 = vector.load %arg12[%c0_35, %c0_36] : memref<1x128xf32, #tpu.memory_space<vmem>>, vector<1x128xf32>
    %44 = vector.broadcast %43 : vector<1x128xf32> to vector<128x128xf32>
    %45 = arith.addf %42, %44 : vector<128x128xf32>
    %c0_37 = arith.constant 0 : index
    %c0_38 = arith.constant 0 : index
    %46 = vector.load %arg13[%c0_37, %c0_38] : memref<128x128xf32, #tpu.memory_space<vmem>>, vector<128x128xf32>
    tpu.vector_store %arg13[%c0_37, %c0_38], %45 {strides = array<i32>} : memref<128x128xf32, #tpu.memory_space<vmem>>, vector<128x128xf32>,
    return
  }
}

</mosaic_0001>

<llo_original>
// kernel: graphsage_forward.1
$region0: #{graphsage_forward.1}
  #allocation0 [shape = 'u32[]', space=smem, size = 0x4, offset = 0x4, fixed_abs, tag = 'smem constant byte address 0x4 - core index']
  #allocation1 [shape = 'u32[72,128]{1,0:T(1,128)}', space=vmem, size = 0x9000, scoped, tag = 'internal scratch']
  %s0 = inlined_call_operand.hbm [shape: bf16[128,128], index: 0, kind: input, shape index: {}]
  %s1 = inlined_call_operand.hbm [shape: bf16[128,128], index: 1, kind: input, shape index: {}]
  %s2 = inlined_call_operand.hbm [shape: bf16[128,128], index: 2, kind: input, shape index: {}]
  %s3 = inlined_call_operand.hbm [shape: bf16[128,128], index: 3, kind: input, shape index: {}]
  %s4 = inlined_call_operand.vmem [shape: f32[1,128], index: 4, kind: input, shape index: {}]
  %s5 = inlined_call_operand.hbm [shape: bf16[128,128], index: 5, kind: input, shape index: {}]
  %s6 = inlined_call_operand.hbm [shape: bf16[128,128], index: 6, kind: input, shape index: {}]
  %s7 = inlined_call_operand.vmem [shape: f32[1,128], index: 7, kind: input, shape index: {}]
  %s8 = inlined_call_operand.hbm [shape: bf16[128,128], index: 8, kind: input, shape index: {}]
  %s9 = inlined_call_operand.hbm [shape: bf16[128,128], index: 9, kind: input, shape index: {}]
  %s10 = inlined_call_operand.vmem [shape: f32[1,128], index: 10, kind: input, shape index: {}]
  %s11 = inlined_call_operand.hbm [shape: bf16[128,128], index: 11, kind: input, shape index: {}]
  %s12 = inlined_call_operand.vmem [shape: f32[1,128], index: 12, kind: input, shape index: {}]
  %s13 = inlined_call_operand.hbm [shape: f32[128,128], index: 13, kind: output, shape index: {}]
  %s14 = sld [smem:[#allocation0]]
  $region98: #{graphsage_forward.1} parent=0
    _
  %s16 = ssub.s32 1, %s14
  %s17 = scalar_select 0, %s16, %s14
  $region1: #{graphsage_forward.1} parent=0
    #allocation2 [shape = 'u8[32768]{0}', space=vmem, size = 0x8000, scoped, tag = 'input window, operand 0, single buffered']
    #allocation3 [shape = 's32[1]{0}', space=sflag, size = 0x4, scoped, tag = 'scoped memory for graphsage_forward.1']
    #allocation4 [shape = 's32[1]{0}', space=sflag, size = 0x4, scoped, tag = 'scoped memory for graphsage_forward.1']
    #allocation5 [shape = 'u8[32768]{0}', space=vmem, size = 0x8000, scoped, tag = 'input window, operand 1, single buffered']
    #allocation6 [shape = 's32[1]{0}', space=sflag, size = 0x4, scoped, tag = 'scoped memory for graphsage_forward.1']
    #allocation7 [shape = 'u8[32768]{0}', space=vmem, size = 0x8000, scoped, tag = 'input window, operand 2, single buffered']
    #allocation8 [shape = 'u8[32768]{0}', space=vmem, size = 0x8000, scoped, tag = 'input window, operand 3, single buffered']
    #allocation9 [shape = 's32[1]{0}', space=sflag, size = 0x4, scoped, tag = 'scoped memory for graphsage_forward.1']
    #allocation10 [shape = 'u8[32768]{0}', space=vmem, size = 0x8000, scoped, tag = 'input window, operand 5, single buffered']
    #allocation11 [shape = 'u8[32768]{0}', space=vmem, size = 0x8000, scoped, tag = 'input window, operand 6, single buffered']
    #allocation12 [shape = 's32[1]{0}', space=sflag, size = 0x4, scoped, tag = 'scoped memory for graphsage_forward.1']
    #allocation13 [shape = 'u8[32768]{0}', space=vmem, size = 0x8000, scoped, tag = 'input window, operand 8, single buffered']
    #allocation14 [shape = 'u8[32768]{0}', space=vmem, size = 0x8000, scoped, tag = 'input window, operand 9, single buffered']
    #allocation15 [shape = 's32[1]{0}', space=sflag, size = 0x4, scoped, tag = 'scoped memory for graphsage_forward.1']
    #allocation16 [shape = 'u8[32768]{0}', space=vmem, size = 0x8000, scoped, tag = 'input window, operand 11, single buffered']
    #allocation17 [shape = 'u8[65536]{0}', space=vmem, size = 0x10000, scoped, tag = 'output window, operand 0, single buffered']
    %18 = vsyncpa [#allocation3], 0
    %19 = vsyncpa [#allocation6], 0
    %20 = vsyncpa [#allocation9], 0
    %21 = vsyncpa [#allocation12], 0
    %22 = vsyncpa [#allocation15], 0
    %23 = vsyncpa [#allocation4], 0
    // Predicated region
    $region2: #{graphsage_forward.1} parent=1 // pred_check
      _
    $region3: #{graphsage_forward.1} parent=1 // pred_check_branch
      %25 = sbr.rel (0) target = $region5
    $region4: #{graphsage_forward.1} parent=1 // pred_region
      %27 = vsyncadd [#allocation3], 0
      %s28 = sshll.u32 %s0, 4
      %s29 = int_to_ptr.hbm [resolvable:$true] %s28
      %s30 = sshll.u32 [#allocation2], 4
      %s31 = int_to_ptr.vmem [resolvable:$true] %s30
      %36 = dma.hbm_to_vmem [thread:$0]  %s29, 1024, %s31, [#allocation3], 64, 64, 4
    $region5: #{graphsage_forward.1} parent=1 // pred_fallthru
      _
    // Predicated region
    $region6: #{graphsage_forward.1} parent=1 // pred_check
      _
    $region7: #{graphsage_forward.1} parent=1 // pred_check_branch
      %38 = sbr.rel (0) target = $region9
    $region8: #{graphsage_forward.1} parent=1 // pred_region
      %40 = vsyncadd [#allocation6], 0
      %s41 = sshll.u32 %s1, 4
      %s42 = int_to_ptr.hbm [resolvable:$true] %s41
      %s43 = sshll.u32 [#allocation5], 4
      %s44 = int_to_ptr.vmem [resolvable:$true] %s43
      %49 = dma.hbm_to_vmem [thread:$0]  %s42, 1024, %s44, [#allocation6], 64, 64, 4
    $region9: #{graphsage_forward.1} parent=1 // pred_fallthru
      _
    // Predicated region
    $region10: #{graphsage_forward.1} parent=1 // pred_check
      _
    $region11: #{graphsage_forward.1} parent=1 // pred_check_branch
      %51 = sbr.rel (0) target = $region13
    $region12: #{graphsage_forward.1} parent=1 // pred_region
      %53 = vsyncadd [#allocation6], 0
      %s54 = sshll.u32 %s2, 4
      %s55 = int_to_ptr.hbm [resolvable:$true] %s54
      %s56 = sshll.u32 [#allocation7], 4
      %s57 = int_to_ptr.vmem [resolvable:$true] %s56
      %62 = dma.hbm_to_vmem [thread:$0]  %s55, 1024, %s57, [#allocation6], 64, 64, 4
    $region13: #{graphsage_forward.1} parent=1 // pred_fallthru
      _
    // Predicated region
    $region14: #{graphsage_forward.1} parent=1 // pred_check
      _
    $region15: #{graphsage_forward.1} parent=1 // pred_check_branch
      %64 = sbr.rel (0) target = $region17
    $region16: #{graphsage_forward.1} parent=1 // pred_region
      %66 = vsyncadd [#allocation9], 0
      %s67 = sshll.u32 %s3, 4
      %s68 = int_to_ptr.hbm [resolvable:$true] %s67
      %s69 = sshll.u32 [#allocation8], 4
      %s70 = int_to_ptr.vmem [resolvable:$true] %s69
      %75 = dma.hbm_to_vmem [thread:$0]  %s68, 1024, %s70, [#allocation9], 64, 64, 4
    $region17: #{graphsage_forward.1} parent=1 // pred_fallthru
      _
    // Predicated region
    $region18: #{graphsage_forward.1} parent=1 // pred_check
      _
    $region19: #{graphsage_forward.1} parent=1 // pred_check_branch
      %77 = sbr.rel (0) target = $region21
    $region20: #{graphsage_forward.1} parent=1 // pred_region
      _
    $region21: #{graphsage_forward.1} parent=1 // pred_fallthru
      _
    // Predicated region
    $region22: #{graphsage_forward.1} parent=1 // pred_check
      _
    $region23: #{graphsage_forward.1} parent=1 // pred_check_branch
      %79 = sbr.rel (0) target = $region25
    $region24: #{graphsage_forward.1} parent=1 // pred_region
      %81 = vsyncadd [#allocation9], 0
      %s82 = sshll.u32 %s5, 4
      %s83 = int_to_ptr.hbm [resolvable:$true] %s82
      %s84 = sshll.u32 [#allocation10], 4
      %s85 = int_to_ptr.vmem [resolvable:$true] %s84
      %90 = dma.hbm_to_vmem [thread:$0]  %s83, 1024, %s85, [#allocation9], 64, 64, 4
    $region25: #{graphsage_forward.1} parent=1 // pred_fallthru
      _
    // Predicated region
    $region26: #{graphsage_forward.1} parent=1 // pred_check
      _
    $region27: #{graphsage_forward.1} parent=1 // pred_check_branch
      %92 = sbr.rel (0) target = $region29
    $region28: #{graphsage_forward.1} parent=1 // pred_region
      %94 = vsyncadd [#allocation12], 0
      %s95 = sshll.u32 %s6, 4
      %s96 = int_to_ptr.hbm [resolvable:$true] %s95
      %s97 = sshll.u32 [#allocation11], 4
      %s98 = int_to_ptr.vmem [resolvable:$true] %s97
      %103 = dma.hbm_to_vmem [thread:$0]  %s96, 1024, %s98, [#allocation12], 64, 64, 4
    $region29: #{graphsage_forward.1} parent=1 // pred_fallthru
      _
    // Predicated region
    $region30: #{graphsage_forward.1} parent=1 // pred_check
      _
    $region31: #{graphsage_forward.1} parent=1 // pred_check_branch
      %105 = sbr.rel (0) target = $region33
    $region32: #{graphsage_forward.1} parent=1 // pred_region
      _
    $region33: #{graphsage_forward.1} parent=1 // pred_fallthru
      _
    // Predicated region
    $region34: #{graphsage_forward.1} parent=1 // pred_check
      _
    $region35: #{graphsage_forward.1} parent=1 // pred_check_branch
      %107 = sbr.rel (0) target = $region37
    $region36: #{graphsage_forward.1} parent=1 // pred_region
      %109 = vsyncadd [#allocation12], 0
      %s110 = sshll.u32 %s8, 4
      %s111 = int_to_ptr.hbm [resolvable:$true] %s110
      %s112 = sshll.u32 [#allocation13], 4
      %s113 = int_to_ptr.vmem [resolvable:$true] %s112
      %118 = dma.hbm_to_vmem [thread:$0]  %s111, 1024, %s113, [#allocation12], 64, 64, 4
    $region37: #{graphsage_forward.1} parent=1 // pred_fallthru
      _
    // Predicated region
    $region38: #{graphsage_forward.1} parent=1 // pred_check
      _
    $region39: #{graphsage_forward.1} parent=1 // pred_check_branch
      %120 = sbr.rel (0) target = $region41
    $region40: #{graphsage_forward.1} parent=1 // pred_region
      %122 = vsyncadd [#allocation15], 0
      %s123 = sshll.u32 %s9, 4
      %s124 = int_to_ptr.hbm [resolvable:$true] %s123
      %s125 = sshll.u32 [#allocation14], 4
      %s126 = int_to_ptr.vmem [resolvable:$true] %s125
      %131 = dma.hbm_to_vmem [thread:$0]  %s124, 1024, %s126, [#allocation15], 64, 64, 4
    $region41: #{graphsage_forward.1} parent=1 // pred_fallthru
      _
    // Predicated region
    $region42: #{graphsage_forward.1} parent=1 // pred_check
      _
    $region43: #{graphsage_forward.1} parent=1 // pred_check_branch
      %133 = sbr.rel (0) target = $region45
    $region44: #{graphsage_forward.1} parent=1 // pred_region
      _
    $region45: #{graphsage_forward.1} parent=1 // pred_fallthru
      _
    // Predicated region
    $region46: #{graphsage_forward.1} parent=1 // pred_check
      _
    $region47: #{graphsage_forward.1} parent=1 // pred_check_branch
      %135 = sbr.rel (0) target = $region49
    $region48: #{graphsage_forward.1} parent=1 // pred_region
      %137 = vsyncadd [#allocation15], 0
      %s138 = sshll.u32 %s11, 4
      %s139 = int_to_ptr.hbm [resolvable:$true] %s138
      %s140 = sshll.u32 [#allocation16], 4
      %s141 = int_to_ptr.vmem [resolvable:$true] %s140
      %146 = dma.hbm_to_vmem [thread:$0]  %s139, 1024, %s141, [#allocation15], 64, 64, 4
    $region49: #{graphsage_forward.1} parent=1 // pred_fallthru
      _
    // Predicated region
    $region50: #{graphsage_forward.1} parent=1 // pred_check
      _
    $region51: #{graphsage_forward.1} parent=1 // pred_check_branch
      %148 = sbr.rel (0) target = $region53
    $region52: #{graphsage_forward.1} parent=1 // pred_region
      _
    $region53: #{graphsage_forward.1} parent=1 // pred_fallthru
      _
    // Predicated region
    $region54: #{graphsage_forward.1} parent=1 // pred_check
      _
    $region55: #{graphsage_forward.1} parent=1 // pred_check_branch
      %150 = sbr.rel (0) target = $region57
    $region56: #{graphsage_forward.1} parent=1 // pred_region
      %152 = dma.done [#allocation3], 1024
    $region57: #{graphsage_forward.1} parent=1 // pred_fallthru
      _
    // Predicated region
    $region58: #{graphsage_forward.1} parent=1 // pred_check
      _
    $region59: #{graphsage_forward.1} parent=1 // pred_check_branch
      %154 = sbr.rel (0) target = $region61
    $region60: #{graphsage_forward.1} parent=1 // pred_region
      %156 = dma.done [#allocation6], 1024
    $region61: #{graphsage_forward.1} parent=1 // pred_fallthru
      _
    // Predicated region
    $region62: #{graphsage_forward.1} parent=1 // pred_check
      _
    $region63: #{graphsage_forward.1} parent=1 // pred_check_branch
      %158 = sbr.rel (0) target = $region65
    $region64: #{graphsage_forward.1} parent=1 // pred_region
      %160 = dma.done [#allocation6], 1024
    $region65: #{graphsage_forward.1} parent=1 // pred_fallthru
      _
    // Predicated region
    $region66: #{graphsage_forward.1} parent=1 // pred_check
      _
    $region67: #{graphsage_forward.1} parent=1 // pred_check_branch
      %162 = sbr.rel (0) target = $region69
    $region68: #{graphsage_forward.1} parent=1 // pred_region
      %164 = dma.done [#allocation9], 1024
    $region69: #{graphsage_forward.1} parent=1 // pred_fallthru
      _
    // Predicated region
    $region70: #{graphsage_forward.1} parent=1 // pred_check
      _
    $region71: #{graphsage_forward.1} parent=1 // pred_check_branch
      %166 = sbr.rel (0) target = $region73
    $region72: #{graphsage_forward.1} parent=1 // pred_region
      %168 = dma.done [#allocation9], 1024
    $region73: #{graphsage_forward.1} parent=1 // pred_fallthru
      _
    // Predicated region
    $region74: #{graphsage_forward.1} parent=1 // pred_check
      _
    $region75: #{graphsage_forward.1} parent=1 // pred_check_branch
      %170 = sbr.rel (0) target = $region77
    $region76: #{graphsage_forward.1} parent=1 // pred_region
      %172 = dma.done [#allocation12], 1024
    $region77: #{graphsage_forward.1} parent=1 // pred_fallthru
      _
    // Predicated region
    $region78: #{graphsage_forward.1} parent=1 // pred_check
      _
    $region79: #{graphsage_forward.1} parent=1 // pred_check_branch
      %174 = sbr.rel (0) target = $region81
    $region80: #{graphsage_forward.1} parent=1 // pred_region
      %176 = dma.done [#allocation12], 1024
    $region81: #{graphsage_forward.1} parent=1 // pred_fallthru
      _
    // Predicated region
    $region82: #{graphsage_forward.1} parent=1 // pred_check
      _
    $region83: #{graphsage_forward.1} parent=1 // pred_check_branch
      %178 = sbr.rel (0) target = $region85
    $region84: #{graphsage_forward.1} parent=1 // pred_region
      %180 = dma.done [#allocation15], 1024
    $region85: #{graphsage_forward.1} parent=1 // pred_fallthru
      _
    // Predicated region
    $region86: #{graphsage_forward.1} parent=1 // pred_check
      _
    $region87: #{graphsage_forward.1} parent=1 // pred_check_branch
      %182 = sbr.rel (0) target = $region89
    $region88: #{graphsage_forward.1} parent=1 // pred_region
      %184 = dma.done [#allocation15], 1024
    $region89: #{graphsage_forward.1} parent=1 // pred_fallthru
      _
    %v185 = vld [vmem:[#allocation2] sm:$0xf]
    %v186 = vld [vmem:[#allocation2 + $0x4] sm:$0xf]
    %v187 = vld [vmem:[#allocation2 + $0x8] sm:$0xf]
    %v188 = vld [vmem:[#allocation2 + $0xc] sm:$0xf]
    %v189 = vld [vmem:[#allocation2 + $0x10] sm:$0xf]
    %v190 = vld [vmem:[#allocation2 + $0x14] sm:$0xf]
    %v191 = vld [vmem:[#allocation2 + $0x18] sm:$0xf]
    %v192 = vld [vmem:[#allocation2 + $0x1c] sm:$0xf]
    %v193 = vld [vmem:[#allocation2 + $0x20] sm:$0xf]
    %v194 = vld [vmem:[#allocation2 + $0x24] sm:$0xf]
    %v195 = vld [vmem:[#allocation2 + $0x28] sm:$0xf]
    %v196 = vld [vmem:[#allocation2 + $0x2c] sm:$0xf]
    %v197 = vld [vmem:[#allocation2 + $0x30] sm:$0xf]
    %v198 = vld [vmem:[#allocation2 + $0x34] sm:$0xf]
    %v199 = vld [vmem:[#allocation2 + $0x38] sm:$0xf]
    %v200 = vld [vmem:[#allocation2 + $0x3c] sm:$0xf]
    %v201 = vld [vmem:[#allocation5] sm:$0xf]
    %v202 = vld [vmem:[#allocation5 + $0x4] sm:$0xf]
    %v203 = vld [vmem:[#allocation5 + $0x8] sm:$0xf]
    %v204 = vld [vmem:[#allocation5 + $0xc] sm:$0xf]
    %v205 = vld [vmem:[#allocation5 + $0x10] sm:$0xf]
    %v206 = vld [vmem:[#allocation5 + $0x14] sm:$0xf]
    %v207 = vld [vmem:[#allocation5 + $0x18] sm:$0xf]
    %v208 = vld [vmem:[#allocation5 + $0x1c] sm:$0xf]
    %v209 = vld [vmem:[#allocation5 + $0x20] sm:$0xf]
    %v210 = vld [vmem:[#allocation5 + $0x24] sm:$0xf]
    %v211 = vld [vmem:[#allocation5 + $0x28] sm:$0xf]
    %v212 = vld [vmem:[#allocation5 + $0x2c] sm:$0xf]
    %v213 = vld [vmem:[#allocation5 + $0x30] sm:$0xf]
    %v214 = vld [vmem:[#allocation5 + $0x34] sm:$0xf]
    %v215 = vld [vmem:[#allocation5 + $0x38] sm:$0xf]
    %v216 = vld [vmem:[#allocation5 + $0x3c] sm:$0xf]
    %v233 = vunpack.c.l.b16 %v185
    %v234 = vunpack.c.l.b16 %v186
    %v235 = vunpack.c.l.b16 %v187
    %v236 = vunpack.c.l.b16 %v188
    %v237 = vunpack.c.l.b16 %v189
    %v238 = vunpack.c.l.b16 %v190
    %v239 = vunpack.c.l.b16 %v191
    %v240 = vunpack.c.l.b16 %v192
    %v241 = vunpack.c.l.b16 %v193
    %v242 = vunpack.c.l.b16 %v194
    %v243 = vunpack.c.l.b16 %v195
    %v244 = vunpack.c.l.b16 %v196
    %v245 = vunpack.c.l.b16 %v197
    %v246 = vunpack.c.l.b16 %v198
    %v247 = vunpack.c.l.b16 %v199
    %v248 = vunpack.c.l.b16 %v200
    %v249 = vpack.c.b16 %v234, %v233
    %v250 = vpack.c.b16 %v236, %v235
    %v251 = vpack.c.b16 %v238, %v237
    %v252 = vpack.c.b16 %v240, %v239
    %v253 = vpack.c.b16 %v242, %v241
    %v254 = vpack.c.b16 %v244, %v243
    %v255 = vpack.c.b16 %v246, %v245
    %v256 = vpack.c.b16 %v248, %v247
    %v281 = vunpack.c.l.b16 %v201
    %v282 = vunpack.c.l.b16 %v202
    %v283 = vunpack.c.l.b16 %v203
    %v284 = vunpack.c.l.b16 %v204
    %v285 = vunpack.c.l.b16 %v205
    %v286 = vunpack.c.l.b16 %v206
    %v287 = vunpack.c.l.b16 %v207
    %v288 = vunpack.c.l.b16 %v208
    %v289 = vunpack.c.l.b16 %v209
    %v290 = vunpack.c.l.b16 %v210
    %v291 = vunpack.c.l.b16 %v211
    %v292 = vunpack.c.l.b16 %v212
    %v293 = vunpack.c.l.b16 %v213
    %v294 = vunpack.c.l.b16 %v214
    %v295 = vunpack.c.l.b16 %v215
    %v296 = vunpack.c.l.b16 %v216
    %v297 = vpack.c.b16 %v282, %v281
    %v298 = vpack.c.b16 %v284, %v283
    %v299 = vpack.c.b16 %v286, %v285
    %v300 = vpack.c.b16 %v288, %v287
    %v301 = vpack.c.b16 %v290, %v289
    %v302 = vpack.c.b16 %v292, %v291
    %v303 = vpack.c.b16 %v294, %v293
    %v304 = vpack.c.b16 %v296, %v295
    %313 = vmatpush.bf16.msra.mxu0 %v304
    %314 = vmatpush.bf16.msra.mxu0 %v303
    %315 = vmatpush.bf16.msra.mxu0 %v302
    %316 = vmatpush.bf16.msra.mxu0 %v301
    %317 = vmatpush.bf16.msra.mxu0 %v300
    %318 = vmatpush.bf16.msra.mxu0 %v299
    %319 = vmatpush.bf16.msra.mxu0 %v298
    %320 = vmatpush.bf16.msra.mxu0 %v297
    %321 = vmatmul.bf16.gmra.mxu0 %v249
    %v322 = vpop.f32.mrf.mxu0
    %v323 = vadd.f32 0.0, %v322
    %v324 = vpop.f32.mrf.mxu0
    %v325 = vadd.f32 0.0, %v324
    %326 = vmatmul.bf16.gmra.mxu0 %v250
    %v327 = vpop.f32.mrf.mxu0
    %v328 = vadd.f32 0.0, %v327
    %v329 = vpop.f32.mrf.mxu0
    %v330 = vadd.f32 0.0, %v329
    %331 = vmatmul.bf16.gmra.mxu0 %v251
    %v332 = vpop.f32.mrf.mxu0
    %v333 = vadd.f32 0.0, %v332
    %v334 = vpop.f32.mrf.mxu0
    %v335 = vadd.f32 0.0, %v334
    %336 = vmatmul.bf16.gmra.mxu0 %v252
    %v337 = vpop.f32.mrf.mxu0
    %v338 = vadd.f32 0.0, %v337
    %v339 = vpop.f32.mrf.mxu0
    %v340 = vadd.f32 0.0, %v339
    %341 = vmatmul.bf16.gmra.mxu0 %v253
    %v342 = vpop.f32.mrf.mxu0
    %v343 = vadd.f32 0.0, %v342
    %v344 = vpop.f32.mrf.mxu0
    %v345 = vadd.f32 0.0, %v344
    %346 = vmatmul.bf16.gmra.mxu0 %v254
    %v347 = vpop.f32.mrf.mxu0
    %v348 = vadd.f32 0.0, %v347
    %v349 = vpop.f32.mrf.mxu0
    %v350 = vadd.f32 0.0, %v349
    %351 = vmatmul.bf16.gmra.mxu0 %v255
    %v352 = vpop.f32.mrf.mxu0
    %v353 = vadd.f32 0.0, %v352
    %v354 = vpop.f32.mrf.mxu0
    %v355 = vadd.f32 0.0, %v354
    %356 = vmatmul.bf16.gmra.mxu0 %v256
    %v357 = vpop.f32.mrf.mxu0
    %v358 = vadd.f32 0.0, %v357
    %v359 = vpop.f32.mrf.mxu0
    %v360 = vadd.f32 0.0, %v359
    %361 = vdwg.mxu0
    %v362 = vpack.c.bf16 %v325, %v323
    %v363 = vpack.c.bf16 %v330, %v328
    %v364 = vpack.c.bf16 %v335, %v333
    %v365 = vpack.c.bf16 %v340, %v338
    %v366 = vpack.c.bf16 %v345, %v343
    %v367 = vpack.c.bf16 %v350, %v348
    %v368 = vpack.c.bf16 %v355, %v353
    %v369 = vpack.c.bf16 %v360, %v358
    %v370 = vld [vmem:[#allocation7] sm:$0xf]
    %v371 = vld [vmem:[#allocation7 + $0x4] sm:$0xf]
    %v372 = vld [vmem:[#allocation7 + $0x8] sm:$0xf]
    %v373 = vld [vmem:[#allocation7 + $0xc] sm:$0xf]
    %v374 = vld [vmem:[#allocation7 + $0x10] sm:$0xf]
    %v375 = vld [vmem:[#allocation7 + $0x14] sm:$0xf]
    %v376 = vld [vmem:[#allocation7 + $0x18] sm:$0xf]
    %v377 = vld [vmem:[#allocation7 + $0x1c] sm:$0xf]
    %v378 = vld [vmem:[#allocation7 + $0x20] sm:$0xf]
    %v379 = vld [vmem:[#allocation7 + $0x24] sm:$0xf]
    %v380 = vld [vmem:[#allocation7 + $0x28] sm:$0xf]
    %v381 = vld [vmem:[#allocation7 + $0x2c] sm:$0xf]
    %v382 = vld [vmem:[#allocation7 + $0x30] sm:$0xf]
    %v383 = vld [vmem:[#allocation7 + $0x34] sm:$0xf]
    %v384 = vld [vmem:[#allocation7 + $0x38] sm:$0xf]
    %v385 = vld [vmem:[#allocation7 + $0x3c] sm:$0xf]
    %v386 = vld [vmem:[#allocation8] sm:$0xf]
    %v387 = vld [vmem:[#allocation8 + $0x4] sm:$0xf]
    %v388 = vld [vmem:[#allocation8 + $0x8] sm:$0xf]
    %v389 = vld [vmem:[#allocation8 + $0xc] sm:$0xf]
    %v390 = vld [vmem:[#allocation8 + $0x10] sm:$0xf]
    %v391 = vld [vmem:[#allocation8 + $0x14] sm:$0xf]
    %v392 = vld [vmem:[#allocation8 + $0x18] sm:$0xf]
    %v393 = vld [vmem:[#allocation8 + $0x1c] sm:$0xf]
    %v394 = vld [vmem:[#allocation8 + $0x20] sm:$0xf]
    %v395 = vld [vmem:[#allocation8 + $0x24] sm:$0xf]
    %v396 = vld [vmem:[#allocation8 + $0x28] sm:$0xf]
    %v397 = vld [vmem:[#allocation8 + $0x2c] sm:$0xf]
    %v398 = vld [vmem:[#allocation8 + $0x30] sm:$0xf]
    %v399 = vld [vmem:[#allocation8 + $0x34] sm:$0xf]
    %v400 = vld [vmem:[#allocation8 + $0x38] sm:$0xf]
    %v401 = vld [vmem:[#allocation8 + $0x3c] sm:$0xf]
    %v418 = vunpack.c.l.b16 %v386
    %v419 = vunpack.c.l.b16 %v387
    %v420 = vunpack.c.l.b16 %v388
    %v421 = vunpack.c.l.b16 %v389
    %v422 = vunpack.c.l.b16 %v390
    %v423 = vunpack.c.l.b16 %v391
    %v424 = vunpack.c.l.b16 %v392
    %v425 = vunpack.c.l.b16 %v393
    %v426 = vunpack.c.l.b16 %v394
    %v427 = vunpack.c.l.b16 %v395
    %v428 = vunpack.c.l.b16 %v396
    %v429 = vunpack.c.l.b16 %v397
    %v430 = vunpack.c.l.b16 %v398
    %v431 = vunpack.c.l.b16 %v399
    %v432 = vunpack.c.l.b16 %v400
    %v433 = vunpack.c.l.b16 %v401
    %v434 = vpack.c.b16 %v419, %v418
    %v435 = vpack.c.b16 %v421, %v420
    %v436 = vpack.c.b16 %v423, %v422
    %v437 = vpack.c.b16 %v425, %v424
    %v438 = vpack.c.b16 %v427, %v426
    %v439 = vpack.c.b16 %v429, %v428
    %v440 = vpack.c.b16 %v431, %v430
    %v441 = vpack.c.b16 %v433, %v432
    %450 = vmatpush.bf16.msra.mxu0 %v441
    %451 = vmatpush.bf16.msra.mxu0 %v440
    %452 = vmatpush.bf16.msra.mxu0 %v439
    %453 = vmatpush.bf16.msra.mxu0 %v438
    %454 = vmatpush.bf16.msra.mxu0 %v437
    %455 = vmatpush.bf16.msra.mxu0 %v436
    %456 = vmatpush.bf16.msra.mxu0 %v435
    %457 = vmatpush.bf16.msra.mxu0 %v434
    %458 = vmatmul.bf16.gmra.mxu0 %v297
    %v459 = vpop.f32.mrf.mxu0
    %v460 = vadd.f32 0.0, %v459
    %v461 = vpop.f32.mrf.mxu0
    %v462 = vadd.f32 0.0, %v461
    %463 = vmatmul.bf16.gmra.mxu0 %v298
    %v464 = vpop.f32.mrf.mxu0
    %v465 = vadd.f32 0.0, %v464
    %v466 = vpop.f32.mrf.mxu0
    %v467 = vadd.f32 0.0, %v466
    %468 = vmatmul.bf16.gmra.mxu0 %v299
    %v469 = vpop.f32.mrf.mxu0
    %v470 = vadd.f32 0.0, %v469
    %v471 = vpop.f32.mrf.mxu0
    %v472 = vadd.f32 0.0, %v471
    %473 = vmatmul.bf16.gmra.mxu0 %v300
    %v474 = vpop.f32.mrf.mxu0
    %v475 = vadd.f32 0.0, %v474
    %v476 = vpop.f32.mrf.mxu0
    %v477 = vadd.f32 0.0, %v476
    %478 = vmatmul.bf16.gmra.mxu0 %v301
    %v479 = vpop.f32.mrf.mxu0
    %v480 = vadd.f32 0.0, %v479
    %v481 = vpop.f32.mrf.mxu0
    %v482 = vadd.f32 0.0, %v481
    %483 = vmatmul.bf16.gmra.mxu0 %v302
    %v484 = vpop.f32.mrf.mxu0
    %v485 = vadd.f32 0.0, %v484
    %v486 = vpop.f32.mrf.mxu0
    %v487 = vadd.f32 0.0, %v486
    %488 = vmatmul.bf16.gmra.mxu0 %v303
    %v489 = vpop.f32.mrf.mxu0
    %v490 = vadd.f32 0.0, %v489
    %v491 = vpop.f32.mrf.mxu0
    %v492 = vadd.f32 0.0, %v491
    %493 = vmatmul.bf16.gmra.mxu0 %v304
    %v494 = vpop.f32.mrf.mxu0
    %v495 = vadd.f32 0.0, %v494
    %v496 = vpop.f32.mrf.mxu0
    %v497 = vadd.f32 0.0, %v496
    %498 = vdwg.mxu0
    %v515 = vunpack.c.l.b16 %v370
    %v516 = vunpack.c.l.b16 %v371
    %v517 = vunpack.c.l.b16 %v372
    %v518 = vunpack.c.l.b16 %v373
    %v519 = vunpack.c.l.b16 %v374
    %v520 = vunpack.c.l.b16 %v375
    %v521 = vunpack.c.l.b16 %v376
    %v522 = vunpack.c.l.b16 %v377
    %v523 = vunpack.c.l.b16 %v378
    %v524 = vunpack.c.l.b16 %v379
    %v525 = vunpack.c.l.b16 %v380
    %v526 = vunpack.c.l.b16 %v381
    %v527 = vunpack.c.l.b16 %v382
    %v528 = vunpack.c.l.b16 %v383
    %v529 = vunpack.c.l.b16 %v384
    %v530 = vunpack.c.l.b16 %v385
    %v531 = vpack.c.b16 %v516, %v515
    %v532 = vpack.c.b16 %v518, %v517
    %v533 = vpack.c.b16 %v520, %v519
    %v534 = vpack.c.b16 %v522, %v521
    %v535 = vpack.c.b16 %v524, %v523
    %v536 = vpack.c.b16 %v526, %v525
    %v537 = vpack.c.b16 %v528, %v527
    %v538 = vpack.c.b16 %v530, %v529
    %547 = vmatpush.bf16.msra.mxu0 %v538
    %548 = vmatpush.bf16.msra.mxu0 %v537
    %549 = vmatpush.bf16.msra.mxu0 %v536
    %550 = vmatpush.bf16.msra.mxu0 %v535
    %551 = vmatpush.bf16.msra.mxu0 %v534
    %552 = vmatpush.bf16.msra.mxu0 %v533
    %553 = vmatpush.bf16.msra.mxu0 %v532
    %554 = vmatpush.bf16.msra.mxu0 %v531
    %555 = vmatmul.bf16.gmra.mxu0 %v362
    %v556 = vpop.f32.mrf.mxu0
    %v557 = vadd.f32 %v460, %v556
    %v558 = vpop.f32.mrf.mxu0
    %v559 = vadd.f32 %v462, %v558
    %560 = vmatmul.bf16.gmra.mxu0 %v363
    %v561 = vpop.f32.mrf.mxu0
    %v562 = vadd.f32 %v465, %v561
    %v563 = vpop.f32.mrf.mxu0
    %v564 = vadd.f32 %v467, %v563
    %565 = vmatmul.bf16.gmra.mxu0 %v364
    %v566 = vpop.f32.mrf.mxu0
    %v567 = vadd.f32 %v470, %v566
    %v568 = vpop.f32.mrf.mxu0
    %v569 = vadd.f32 %v472, %v568
    %570 = vmatmul.bf16.gmra.mxu0 %v365
    %v571 = vpop.f32.mrf.mxu0
    %v572 = vadd.f32 %v475, %v571
    %v573 = vpop.f32.mrf.mxu0
    %v574 = vadd.f32 %v477, %v573
    %575 = vmatmul.bf16.gmra.mxu0 %v366
    %v576 = vpop.f32.mrf.mxu0
    %v577 = vadd.f32 %v480, %v576
    %v578 = vpop.f32.mrf.mxu0
    %v579 = vadd.f32 %v482, %v578
    %580 = vmatmul.bf16.gmra.mxu0 %v367
    %v581 = vpop.f32.mrf.mxu0
    %v582 = vadd.f32 %v485, %v581
    %v583 = vpop.f32.mrf.mxu0
    %v584 = vadd.f32 %v487, %v583
    %585 = vmatmul.bf16.gmra.mxu0 %v368
    %v586 = vpop.f32.mrf.mxu0
    %v587 = vadd.f32 %v490, %v586
    %v588 = vpop.f32.mrf.mxu0
    %v589 = vadd.f32 %v492, %v588
    %590 = vmatmul.bf16.gmra.mxu0 %v369
    %v591 = vpop.f32.mrf.mxu0
    %v592 = vadd.f32 %v495, %v591
    %v593 = vpop.f32.mrf.mxu0
    %v594 = vadd.f32 %v497, %v593
    %595 = vdwg.mxu0
    %v596 = vld [vmem:[%s4] sm:$0x1]
    %v598 = vperm.slane %v596, 0
    %v600 = vadd.f32 %v557, %v598
    %v601 = vadd.f32 %v559, %v598
    %v602 = vadd.f32 %v562, %v598
    %v603 = vadd.f32 %v564, %v598
    %v604 = vadd.f32 %v567, %v598
    %v605 = vadd.f32 %v569, %v598
    %v606 = vadd.f32 %v572, %v598
    %v607 = vadd.f32 %v574, %v598
    %v608 = vadd.f32 %v577, %v598
    %v609 = vadd.f32 %v579, %v598
    %v610 = vadd.f32 %v582, %v598
    %v611 = vadd.f32 %v584, %v598
    %v612 = vadd.f32 %v587, %v598
    %v613 = vadd.f32 %v589, %v598
    %v614 = vadd.f32 %v592, %v598
    %v615 = vadd.f32 %v594, %v598
    %v616 = vmax.f32 %v600, 0.0
    %v617 = vmax.f32 %v601, 0.0
    %v618 = vmax.f32 %v602, 0.0
    %v619 = vmax.f32 %v603, 0.0
    %v620 = vmax.f32 %v604, 0.0
    %v621 = vmax.f32 %v605, 0.0
    %v622 = vmax.f32 %v606, 0.0
    %v623 = vmax.f32 %v607, 0.0
    %v624 = vmax.f32 %v608, 0.0
    %v625 = vmax.f32 %v609, 0.0
    %v626 = vmax.f32 %v610, 0.0
    %v627 = vmax.f32 %v611, 0.0
    %v628 = vmax.f32 %v612, 0.0
    %v629 = vmax.f32 %v613, 0.0
    %v630 = vmax.f32 %v614, 0.0
    %v631 = vmax.f32 %v615, 0.0
    %v632 = vpack.c.bf16 %v617, %v616
    %v633 = vpack.c.bf16 %v619, %v618
    %v634 = vpack.c.bf16 %v621, %v620
    %v635 = vpack.c.bf16 %v623, %v622
    %v636 = vpack.c.bf16 %v625, %v624
    %v637 = vpack.c.bf16 %v627, %v626
    %v638 = vpack.c.bf16 %v629, %v628
    %v639 = vpack.c.bf16 %v631, %v630
    %640 = vmatpush.bf16.msra.mxu0 %v639
    %641 = vmatpush.bf16.msra.mxu0 %v638
    %642 = vmatpush.bf16.msra.mxu0 %v637
    %643 = vmatpush.bf16.msra.mxu0 %v636
    %644 = vmatpush.bf16.msra.mxu0 %v635
    %645 = vmatpush.bf16.msra.mxu0 %v634
    %646 = vmatpush.bf16.msra.mxu0 %v633
    %647 = vmatpush.bf16.msra.mxu0 %v632
    %648 = vmatmul.bf16.gmra.mxu0 %v249
    %v649 = vpop.f32.mrf.mxu0
    %v650 = vadd.f32 0.0, %v649
    %v651 = vpop.f32.mrf.mxu0
    %v652 = vadd.f32 0.0, %v651
    %653 = vmatmul.bf16.gmra.mxu0 %v250
    %v654 = vpop.f32.mrf.mxu0
    %v655 = vadd.f32 0.0, %v654
    %v656 = vpop.f32.mrf.mxu0
    %v657 = vadd.f32 0.0, %v656
    %658 = vmatmul.bf16.gmra.mxu0 %v251
    %v659 = vpop.f32.mrf.mxu0
    %v660 = vadd.f32 0.0, %v659
    %v661 = vpop.f32.mrf.mxu0
    %v662 = vadd.f32 0.0, %v661
    %663 = vmatmul.bf16.gmra.mxu0 %v252
    %v664 = vpop.f32.mrf.mxu0
    %v665 = vadd.f32 0.0, %v664
    %v666 = vpop.f32.mrf.mxu0
    %v667 = vadd.f32 0.0, %v666
    %668 = vmatmul.bf16.gmra.mxu0 %v253
    %v669 = vpop.f32.mrf.mxu0
    %v670 = vadd.f32 0.0, %v669
    %v671 = vpop.f32.mrf.mxu0
    %v672 = vadd.f32 0.0, %v671
    %673 = vmatmul.bf16.gmra.mxu0 %v254
    %v674 = vpop.f32.mrf.mxu0
    %v675 = vadd.f32 0.0, %v674
    %v676 = vpop.f32.mrf.mxu0
    %v677 = vadd.f32 0.0, %v676
    %678 = vmatmul.bf16.gmra.mxu0 %v255
    %v679 = vpop.f32.mrf.mxu0
    %v680 = vadd.f32 0.0, %v679
    %v681 = vpop.f32.mrf.mxu0
    %v682 = vadd.f32 0.0, %v681
    %683 = vmatmul.bf16.gmra.mxu0 %v256
    %v684 = vpop.f32.mrf.mxu0
    %v685 = vadd.f32 0.0, %v684
    %v686 = vpop.f32.mrf.mxu0
    %v687 = vadd.f32 0.0, %v686
    %688 = vdwg.mxu0
    %v689 = vpack.c.bf16 %v652, %v650
    %v690 = vpack.c.bf16 %v657, %v655
    %v691 = vpack.c.bf16 %v662, %v660
    %v692 = vpack.c.bf16 %v667, %v665
    %v693 = vpack.c.bf16 %v672, %v670
    %v694 = vpack.c.bf16 %v677, %v675
    %v695 = vpack.c.bf16 %v682, %v680
    %v696 = vpack.c.bf16 %v687, %v685
    %v697 = vld [vmem:[#allocation10] sm:$0xf]
    %v698 = vld [vmem:[#allocation10 + $0x4] sm:$0xf]
    %v699 = vld [vmem:[#allocation10 + $0x8] sm:$0xf]
    %v700 = vld [vmem:[#allocation10 + $0xc] sm:$0xf]
    %v701 = vld [vmem:[#allocation10 + $0x10] sm:$0xf]
    %v702 = vld [vmem:[#allocation10 + $0x14] sm:$0xf]
    %v703 = vld [vmem:[#allocation10 + $0x18] sm:$0xf]
    %v704 = vld [vmem:[#allocation10 + $0x1c] sm:$0xf]
    %v705 = vld [vmem:[#allocation10 + $0x20] sm:$0xf]
    %v706 = vld [vmem:[#allocation10 + $0x24] sm:$0xf]
    %v707 = vld [vmem:[#allocation10 + $0x28] sm:$0xf]
    %v708 = vld [vmem:[#allocation10 + $0x2c] sm:$0xf]
    %v709 = vld [vmem:[#allocation10 + $0x30] sm:$0xf]
    %v710 = vld [vmem:[#allocation10 + $0x34] sm:$0xf]
    %v711 = vld [vmem:[#allocation10 + $0x38] sm:$0xf]
    %v712 = vld [vmem:[#allocation10 + $0x3c] sm:$0xf]
    %v713 = vld [vmem:[#allocation11] sm:$0xf]
    %v714 = vld [vmem:[#allocation11 + $0x4] sm:$0xf]
    %v715 = vld [vmem:[#allocation11 + $0x8] sm:$0xf]
    %v716 = vld [vmem:[#allocation11 + $0xc] sm:$0xf]
    %v717 = vld [vmem:[#allocation11 + $0x10] sm:$0xf]
    %v718 = vld [vmem:[#allocation11 + $0x14] sm:$0xf]
    %v719 = vld [vmem:[#allocation11 + $0x18] sm:$0xf]
    %v720 = vld [vmem:[#allocation11 + $0x1c] sm:$0xf]
    %v721 = vld [vmem:[#allocation11 + $0x20] sm:$0xf]
    %v722 = vld [vmem:[#allocation11 + $0x24] sm:$0xf]
    %v723 = vld [vmem:[#allocation11 + $0x28] sm:$0xf]
    %v724 = vld [vmem:[#allocation11 + $0x2c] sm:$0xf]
    %v725 = vld [vmem:[#allocation11 + $0x30] sm:$0xf]
    %v726 = vld [vmem:[#allocation11 + $0x34] sm:$0xf]
    %v727 = vld [vmem:[#allocation11 + $0x38] sm:$0xf]
    %v728 = vld [vmem:[#allocation11 + $0x3c] sm:$0xf]
    %v745 = vunpack.c.l.b16 %v713
    %v746 = vunpack.c.l.b16 %v714
    %v747 = vunpack.c.l.b16 %v715
    %v748 = vunpack.c.l.b16 %v716
    %v749 = vunpack.c.l.b16 %v717
    %v750 = vunpack.c.l.b16 %v718
    %v751 = vunpack.c.l.b16 %v719
    %v752 = vunpack.c.l.b16 %v720
    %v753 = vunpack.c.l.b16 %v721
    %v754 = vunpack.c.l.b16 %v722
    %v755 = vunpack.c.l.b16 %v723
    %v756 = vunpack.c.l.b16 %v724
    %v757 = vunpack.c.l.b16 %v725
    %v758 = vunpack.c.l.b16 %v726
    %v759 = vunpack.c.l.b16 %v727
    %v760 = vunpack.c.l.b16 %v728
    %v761 = vpack.c.b16 %v746, %v745
    %v762 = vpack.c.b16 %v748, %v747
    %v763 = vpack.c.b16 %v750, %v749
    %v764 = vpack.c.b16 %v752, %v751
    %v765 = vpack.c.b16 %v754, %v753
    %v766 = vpack.c.b16 %v756, %v755
    %v767 = vpack.c.b16 %v758, %v757
    %v768 = vpack.c.b16 %v760, %v759
    %777 = vmatpush.bf16.msra.mxu0 %v768
    %778 = vmatpush.bf16.msra.mxu0 %v767
    %779 = vmatpush.bf16.msra.mxu0 %v766
    %780 = vmatpush.bf16.msra.mxu0 %v765
    %781 = vmatpush.bf16.msra.mxu0 %v764
    %782 = vmatpush.bf16.msra.mxu0 %v763
    %783 = vmatpush.bf16.msra.mxu0 %v762
    %784 = vmatpush.bf16.msra.mxu0 %v761
    %785 = vmatmul.bf16.gmra.mxu0 %v632
    %v786 = vpop.f32.mrf.mxu0
    %v787 = vadd.f32 0.0, %v786
    %v788 = vpop.f32.mrf.mxu0
    %v789 = vadd.f32 0.0, %v788
    %790 = vmatmul.bf16.gmra.mxu0 %v633
    %v791 = vpop.f32.mrf.mxu0
    %v792 = vadd.f32 0.0, %v791
    %v793 = vpop.f32.mrf.mxu0
    %v794 = vadd.f32 0.0, %v793
    %795 = vmatmul.bf16.gmra.mxu0 %v634
    %v796 = vpop.f32.mrf.mxu0
    %v797 = vadd.f32 0.0, %v796
    %v798 = vpop.f32.mrf.mxu0
    %v799 = vadd.f32 0.0, %v798
    %800 = vmatmul.bf16.gmra.mxu0 %v635
    %v801 = vpop.f32.mrf.mxu0
    %v802 = vadd.f32 0.0, %v801
    %v803 = vpop.f32.mrf.mxu0
    %v804 = vadd.f32 0.0, %v803
    %805 = vmatmul.bf16.gmra.mxu0 %v636
    %v806 = vpop.f32.mrf.mxu0
    %v807 = vadd.f32 0.0, %v806
    %v808 = vpop.f32.mrf.mxu0
    %v809 = vadd.f32 0.0, %v808
    %810 = vmatmul.bf16.gmra.mxu0 %v637
    %v811 = vpop.f32.mrf.mxu0
    %v812 = vadd.f32 0.0, %v811
    %v813 = vpop.f32.mrf.mxu0
    %v814 = vadd.f32 0.0, %v813
    %815 = vmatmul.bf16.gmra.mxu0 %v638
    %v816 = vpop.f32.mrf.mxu0
    %v817 = vadd.f32 0.0, %v816
    %v818 = vpop.f32.mrf.mxu0
    %v819 = vadd.f32 0.0, %v818
    %820 = vmatmul.bf16.gmra.mxu0 %v639
    %v821 = vpop.f32.mrf.mxu0
    %v822 = vadd.f32 0.0, %v821
    %v823 = vpop.f32.mrf.mxu0
    %v824 = vadd.f32 0.0, %v823
    %825 = vdwg.mxu0
    %v842 = vunpack.c.l.b16 %v697
    %v843 = vunpack.c.l.b16 %v698
    %v844 = vunpack.c.l.b16 %v699
    %v845 = vunpack.c.l.b16 %v700
    %v846 = vunpack.c.l.b16 %v701
    %v847 = vunpack.c.l.b16 %v702
    %v848 = vunpack.c.l.b16 %v703
    %v849 = vunpack.c.l.b16 %v704
    %v850 = vunpack.c.l.b16 %v705
    %v851 = vunpack.c.l.b16 %v706
    %v852 = vunpack.c.l.b16 %v707
    %v853 = vunpack.c.l.b16 %v708
    %v854 = vunpack.c.l.b16 %v709
    %v855 = vunpack.c.l.b16 %v710
    %v856 = vunpack.c.l.b16 %v711
    %v857 = vunpack.c.l.b16 %v712
    %v858 = vpack.c.b16 %v843, %v842
    %v859 = vpack.c.b16 %v845, %v844
    %v860 = vpack.c.b16 %v847, %v846
    %v861 = vpack.c.b16 %v849, %v848
    %v862 = vpack.c.b16 %v851, %v850
    %v863 = vpack.c.b16 %v853, %v852
    %v864 = vpack.c.b16 %v855, %v854
    %v865 = vpack.c.b16 %v857, %v856
    %874 = vmatpush.bf16.msra.mxu0 %v865
    %875 = vmatpush.bf16.msra.mxu0 %v864
    %876 = vmatpush.bf16.msra.mxu0 %v863
    %877 = vmatpush.bf16.msra.mxu0 %v862
    %878 = vmatpush.bf16.msra.mxu0 %v861
    %879 = vmatpush.bf16.msra.mxu0 %v860
    %880 = vmatpush.bf16.msra.mxu0 %v859
    %881 = vmatpush.bf16.msra.mxu0 %v858
    %882 = vmatmul.bf16.gmra.mxu0 %v689
    %v883 = vpop.f32.mrf.mxu0
    %v884 = vadd.f32 %v787, %v883
    %v885 = vpop.f32.mrf.mxu0
    %v886 = vadd.f32 %v789, %v885
    %887 = vmatmul.bf16.gmra.mxu0 %v690
    %v888 = vpop.f32.mrf.mxu0
    %v889 = vadd.f32 %v792, %v888
    %v890 = vpop.f32.mrf.mxu0
    %v891 = vadd.f32 %v794, %v890
    %892 = vmatmul.bf16.gmra.mxu0 %v691
    %v893 = vpop.f32.mrf.mxu0
    %v894 = vadd.f32 %v797, %v893
    %v895 = vpop.f32.mrf.mxu0
    %v896 = vadd.f32 %v799, %v895
    %897 = vmatmul.bf16.gmra.mxu0 %v692
    %v898 = vpop.f32.mrf.mxu0
    %v899 = vadd.f32 %v802, %v898
    %v900 = vpop.f32.mrf.mxu0
    %v901 = vadd.f32 %v804, %v900
    %902 = vmatmul.bf16.gmra.mxu0 %v693
    %v903 = vpop.f32.mrf.mxu0
    %v904 = vadd.f32 %v807, %v903
    %v905 = vpop.f32.mrf.mxu0
    %v906 = vadd.f32 %v809, %v905
    %907 = vmatmul.bf16.gmra.mxu0 %v694
    %v908 = vpop.f32.mrf.mxu0
    %v909 = vadd.f32 %v812, %v908
    %v910 = vpop.f32.mrf.mxu0
    %v911 = vadd.f32 %v814, %v910
    %912 = vmatmul.bf16.gmra.mxu0 %v695
    %v913 = vpop.f32.mrf.mxu0
    %v914 = vadd.f32 %v817, %v913
    %v915 = vpop.f32.mrf.mxu0
    %v916 = vadd.f32 %v819, %v915
    %917 = vmatmul.bf16.gmra.mxu0 %v696
    %v918 = vpop.f32.mrf.mxu0
    %v919 = vadd.f32 %v822, %v918
    %v920 = vpop.f32.mrf.mxu0
    %v921 = vadd.f32 %v824, %v920
    %922 = vdwg.mxu0
    %v923 = vld [vmem:[%s7] sm:$0x1]
    %v925 = vperm.slane %v923, 0
    %v927 = vadd.f32 %v884, %v925
    %v928 = vadd.f32 %v886, %v925
    %v929 = vadd.f32 %v889, %v925
    %v930 = vadd.f32 %v891, %v925
    %v931 = vadd.f32 %v894, %v925
    %v932 = vadd.f32 %v896, %v925
    %v933 = vadd.f32 %v899, %v925
    %v934 = vadd.f32 %v901, %v925
    %v935 = vadd.f32 %v904, %v925
    %v936 = vadd.f32 %v906, %v925
    %v937 = vadd.f32 %v909, %v925
    %v938 = vadd.f32 %v911, %v925
    %v939 = vadd.f32 %v914, %v925
    %v940 = vadd.f32 %v916, %v925
    %v941 = vadd.f32 %v919, %v925
    %v942 = vadd.f32 %v921, %v925
    %v943 = vmax.f32 %v927, 0.0
    %v944 = vmax.f32 %v928, 0.0
    %v945 = vmax.f32 %v929, 0.0
    %v946 = vmax.f32 %v930, 0.0
    %v947 = vmax.f32 %v931, 0.0
    %v948 = vmax.f32 %v932, 0.0
    %v949 = vmax.f32 %v933, 0.0
    %v950 = vmax.f32 %v934, 0.0
    %v951 = vmax.f32 %v935, 0.0
    %v952 = vmax.f32 %v936, 0.0
    %v953 = vmax.f32 %v937, 0.0
    %v954 = vmax.f32 %v938, 0.0
    %v955 = vmax.f32 %v939, 0.0
    %v956 = vmax.f32 %v940, 0.0
    %v957 = vmax.f32 %v941, 0.0
    %v958 = vmax.f32 %v942, 0.0
    %v959 = vpack.c.bf16 %v944, %v943
    %v960 = vpack.c.bf16 %v946, %v945
    %v961 = vpack.c.bf16 %v948, %v947
    %v962 = vpack.c.bf16 %v950, %v949
    %v963 = vpack.c.bf16 %v952, %v951
    %v964 = vpack.c.bf16 %v954, %v953
    %v965 = vpack.c.bf16 %v956, %v955
    %v966 = vpack.c.bf16 %v958, %v957
    %967 = vmatpush.bf16.msra.mxu0 %v966
    %968 = vmatpush.bf16.msra.mxu0 %v965
    %969 = vmatpush.bf16.msra.mxu0 %v964
    %970 = vmatpush.bf16.msra.mxu0 %v963
    %971 = vmatpush.bf16.msra.mxu0 %v962
    %972 = vmatpush.bf16.msra.mxu0 %v961
    %973 = vmatpush.bf16.msra.mxu0 %v960
    %974 = vmatpush.bf16.msra.mxu0 %v959
    %975 = vmatmul.bf16.gmra.mxu0 %v249
    %v976 = vpop.f32.mrf.mxu0
    %v977 = vadd.f32 0.0, %v976
    %v978 = vpop.f32.mrf.mxu0
    %v979 = vadd.f32 0.0, %v978
    %980 = vmatmul.bf16.gmra.mxu0 %v250
    %v981 = vpop.f32.mrf.mxu0
    %v982 = vadd.f32 0.0, %v981
    %v983 = vpop.f32.mrf.mxu0
    %v984 = vadd.f32 0.0, %v983
    %985 = vmatmul.bf16.gmra.mxu0 %v251
    %v986 = vpop.f32.mrf.mxu0
    %v987 = vadd.f32 0.0, %v986
    %v988 = vpop.f32.mrf.mxu0
    %v989 = vadd.f32 0.0, %v988
    %990 = vmatmul.bf16.gmra.mxu0 %v252
    %v991 = vpop.f32.mrf.mxu0
    %v992 = vadd.f32 0.0, %v991
    %v993 = vpop.f32.mrf.mxu0
    %v994 = vadd.f32 0.0, %v993
    %995 = vmatmul.bf16.gmra.mxu0 %v253
    %v996 = vpop.f32.mrf.mxu0
    %v997 = vadd.f32 0.0, %v996
    %v998 = vpop.f32.mrf.mxu0
    %v999 = vadd.f32 0.0, %v998
    %1000 = vmatmul.bf16.gmra.mxu0 %v254
    %v1001 = vpop.f32.mrf.mxu0
    %v1002 = vadd.f32 0.0, %v1001
    %v1003 = vpop.f32.mrf.mxu0
    %v1004 = vadd.f32 0.0, %v1003
    %1005 = vmatmul.bf16.gmra.mxu0 %v255
    %v1006 = vpop.f32.mrf.mxu0
    %v1007 = vadd.f32 0.0, %v1006
    %v1008 = vpop.f32.mrf.mxu0
    %v1009 = vadd.f32 0.0, %v1008
    %1010 = vmatmul.bf16.gmra.mxu0 %v256
    %v1011 = vpop.f32.mrf.mxu0
    %v1012 = vadd.f32 0.0, %v1011
    %v1013 = vpop.f32.mrf.mxu0
    %v1014 = vadd.f32 0.0, %v1013
    %1015 = vdwg.mxu0
    %v1016 = vpack.c.bf16 %v979, %v977
    %v1017 = vpack.c.bf16 %v984, %v982
    %v1018 = vpack.c.bf16 %v989, %v987
    %v1019 = vpack.c.bf16 %v994, %v992
    %v1020 = vpack.c.bf16 %v999, %v997
    %v1021 = vpack.c.bf16 %v1004, %v1002
    %v1022 = vpack.c.bf16 %v1009, %v1007
    %v1023 = vpack.c.bf16 %v1014, %v1012
    %v1024 = vld [vmem:[#allocation13] sm:$0xf]
    %v1025 = vld [vmem:[#allocation13 + $0x4] sm:$0xf]
    %v1026 = vld [vmem:[#allocation13 + $0x8] sm:$0xf]
    %v1027 = vld [vmem:[#allocation13 + $0xc] sm:$0xf]
    %v1028 = vld [vmem:[#allocation13 + $0x10] sm:$0xf]
    %v1029 = vld [vmem:[#allocation13 + $0x14] sm:$0xf]
    %v1030 = vld [vmem:[#allocation13 + $0x18] sm:$0xf]
    %v1031 = vld [vmem:[#allocation13 + $0x1c] sm:$0xf]
    %v1032 = vld [vmem:[#allocation13 + $0x20] sm:$0xf]
    %v1033 = vld [vmem:[#allocation13 + $0x24] sm:$0xf]
    %v1034 = vld [vmem:[#allocation13 + $0x28] sm:$0xf]
    %v1035 = vld [vmem:[#allocation13 + $0x2c] sm:$0xf]
    %v1036 = vld [vmem:[#allocation13 + $0x30] sm:$0xf]
    %v1037 = vld [vmem:[#allocation13 + $0x34] sm:$0xf]
    %v1038 = vld [vmem:[#allocation13 + $0x38] sm:$0xf]
    %v1039 = vld [vmem:[#allocation13 + $0x3c] sm:$0xf]
    %v1040 = vld [vmem:[#allocation14] sm:$0xf]
    %v1041 = vld [vmem:[#allocation14 + $0x4] sm:$0xf]
    %v1042 = vld [vmem:[#allocation14 + $0x8] sm:$0xf]
    %v1043 = vld [vmem:[#allocation14 + $0xc] sm:$0xf]
    %v1044 = vld [vmem:[#allocation14 + $0x10] sm:$0xf]
    %v1045 = vld [vmem:[#allocation14 + $0x14] sm:$0xf]
    %v1046 = vld [vmem:[#allocation14 + $0x18] sm:$0xf]
    %v1047 = vld [vmem:[#allocation14 + $0x1c] sm:$0xf]
    %v1048 = vld [vmem:[#allocation14 + $0x20] sm:$0xf]
    %v1049 = vld [vmem:[#allocation14 + $0x24] sm:$0xf]
    %v1050 = vld [vmem:[#allocation14 + $0x28] sm:$0xf]
    %v1051 = vld [vmem:[#allocation14 + $0x2c] sm:$0xf]
    %v1052 = vld [vmem:[#allocation14 + $0x30] sm:$0xf]
    %v1053 = vld [vmem:[#allocation14 + $0x34] sm:$0xf]
    %v1054 = vld [vmem:[#allocation14 + $0x38] sm:$0xf]
    %v1055 = vld [vmem:[#allocation14 + $0x3c] sm:$0xf]
    %v1072 = vunpack.c.l.b16 %v1040
    %v1073 = vunpack.c.l.b16 %v1041
    %v1074 = vunpack.c.l.b16 %v1042
    %v1075 = vunpack.c.l.b16 %v1043
    %v1076 = vunpack.c.l.b16 %v1044
    %v1077 = vunpack.c.l.b16 %v1045
    %v1078 = vunpack.c.l.b16 %v1046
    %v1079 = vunpack.c.l.b16 %v1047
    %v1080 = vunpack.c.l.b16 %v1048
    %v1081 = vunpack.c.l.b16 %v1049
    %v1082 = vunpack.c.l.b16 %v1050
    %v1083 = vunpack.c.l.b16 %v1051
    %v1084 = vunpack.c.l.b16 %v1052
    %v1085 = vunpack.c.l.b16 %v1053
    %v1086 = vunpack.c.l.b16 %v1054
    %v1087 = vunpack.c.l.b16 %v1055
    %v1088 = vpack.c.b16 %v1073, %v1072
    %v1089 = vpack.c.b16 %v1075, %v1074
    %v1090 = vpack.c.b16 %v1077, %v1076
    %v1091 = vpack.c.b16 %v1079, %v1078
    %v1092 = vpack.c.b16 %v1081, %v1080
    %v1093 = vpack.c.b16 %v1083, %v1082
    %v1094 = vpack.c.b16 %v1085, %v1084
    %v1095 = vpack.c.b16 %v1087, %v1086
    %1104 = vmatpush.bf16.msra.mxu0 %v1095
    %1105 = vmatpush.bf16.msra.mxu0 %v1094
    %1106 = vmatpush.bf16.msra.mxu0 %v1093
    %1107 = vmatpush.bf16.msra.mxu0 %v1092
    %1108 = vmatpush.bf16.msra.mxu0 %v1091
    %1109 = vmatpush.bf16.msra.mxu0 %v1090
    %1110 = vmatpush.bf16.msra.mxu0 %v1089
    %1111 = vmatpush.bf16.msra.mxu0 %v1088
    %1112 = vmatmul.bf16.gmra.mxu0 %v959
    %v1113 = vpop.f32.mrf.mxu0
    %v1114 = vadd.f32 0.0, %v1113
    %v1115 = vpop.f32.mrf.mxu0
    %v1116 = vadd.f32 0.0, %v1115
    %1117 = vmatmul.bf16.gmra.mxu0 %v960
    %v1118 = vpop.f32.mrf.mxu0
    %v1119 = vadd.f32 0.0, %v1118
    %v1120 = vpop.f32.mrf.mxu0
    %v1121 = vadd.f32 0.0, %v1120
    %1122 = vmatmul.bf16.gmra.mxu0 %v961
    %v1123 = vpop.f32.mrf.mxu0
    %v1124 = vadd.f32 0.0, %v1123
    %v1125 = vpop.f32.mrf.mxu0
    %v1126 = vadd.f32 0.0, %v1125
    %1127 = vmatmul.bf16.gmra.mxu0 %v962
    %v1128 = vpop.f32.mrf.mxu0
    %v1129 = vadd.f32 0.0, %v1128
    %v1130 = vpop.f32.mrf.mxu0
    %v1131 = vadd.f32 0.0, %v1130
    %1132 = vmatmul.bf16.gmra.mxu0 %v963
    %v1133 = vpop.f32.mrf.mxu0
    %v1134 = vadd.f32 0.0, %v1133
    %v1135 = vpop.f32.mrf.mxu0
    %v1136 = vadd.f32 0.0, %v1135
    %1137 = vmatmul.bf16.gmra.mxu0 %v964
    %v1138 = vpop.f32.mrf.mxu0
    %v1139 = vadd.f32 0.0, %v1138
    %v1140 = vpop.f32.mrf.mxu0
    %v1141 = vadd.f32 0.0, %v1140
    %1142 = vmatmul.bf16.gmra.mxu0 %v965
    %v1143 = vpop.f32.mrf.mxu0
    %v1144 = vadd.f32 0.0, %v1143
    %v1145 = vpop.f32.mrf.mxu0
    %v1146 = vadd.f32 0.0, %v1145
    %1147 = vmatmul.bf16.gmra.mxu0 %v966
    %v1148 = vpop.f32.mrf.mxu0
    %v1149 = vadd.f32 0.0, %v1148
    %v1150 = vpop.f32.mrf.mxu0
    %v1151 = vadd.f32 0.0, %v1150
    %1152 = vdwg.mxu0
    %v1169 = vunpack.c.l.b16 %v1024
    %v1170 = vunpack.c.l.b16 %v1025
    %v1171 = vunpack.c.l.b16 %v1026
    %v1172 = vunpack.c.l.b16 %v1027
    %v1173 = vunpack.c.l.b16 %v1028
    %v1174 = vunpack.c.l.b16 %v1029
    %v1175 = vunpack.c.l.b16 %v1030
    %v1176 = vunpack.c.l.b16 %v1031
    %v1177 = vunpack.c.l.b16 %v1032
    %v1178 = vunpack.c.l.b16 %v1033
    %v1179 = vunpack.c.l.b16 %v1034
    %v1180 = vunpack.c.l.b16 %v1035
    %v1181 = vunpack.c.l.b16 %v1036
    %v1182 = vunpack.c.l.b16 %v1037
    %v1183 = vunpack.c.l.b16 %v1038
    %v1184 = vunpack.c.l.b16 %v1039
    %v1185 = vpack.c.b16 %v1170, %v1169
    %v1186 = vpack.c.b16 %v1172, %v1171
    %v1187 = vpack.c.b16 %v1174, %v1173
    %v1188 = vpack.c.b16 %v1176, %v1175
    %v1189 = vpack.c.b16 %v1178, %v1177
    %v1190 = vpack.c.b16 %v1180, %v1179
    %v1191 = vpack.c.b16 %v1182, %v1181
    %v1192 = vpack.c.b16 %v1184, %v1183
    %1201 = vmatpush.bf16.msra.mxu0 %v1192
    %1202 = vmatpush.bf16.msra.mxu0 %v1191
    %1203 = vmatpush.bf16.msra.mxu0 %v1190
    %1204 = vmatpush.bf16.msra.mxu0 %v1189
    %1205 = vmatpush.bf16.msra.mxu0 %v1188
    %1206 = vmatpush.bf16.msra.mxu0 %v1187
    %1207 = vmatpush.bf16.msra.mxu0 %v1186
    %1208 = vmatpush.bf16.msra.mxu0 %v1185
    %1209 = vmatmul.bf16.gmra.mxu0 %v1016
    %v1210 = vpop.f32.mrf.mxu0
    %v1211 = vadd.f32 %v1114, %v1210
    %v1212 = vpop.f32.mrf.mxu0
    %v1213 = vadd.f32 %v1116, %v1212
    %1214 = vmatmul.bf16.gmra.mxu0 %v1017
    %v1215 = vpop.f32.mrf.mxu0
    %v1216 = vadd.f32 %v1119, %v1215
    %v1217 = vpop.f32.mrf.mxu0
    %v1218 = vadd.f32 %v1121, %v1217
    %1219 = vmatmul.bf16.gmra.mxu0 %v1018
    %v1220 = vpop.f32.mrf.mxu0
    %v1221 = vadd.f32 %v1124, %v1220
    %v1222 = vpop.f32.mrf.mxu0
    %v1223 = vadd.f32 %v1126, %v1222
    %1224 = vmatmul.bf16.gmra.mxu0 %v1019
    %v1225 = vpop.f32.mrf.mxu0
    %v1226 = vadd.f32 %v1129, %v1225
    %v1227 = vpop.f32.mrf.mxu0
    %v1228 = vadd.f32 %v1131, %v1227
    %1229 = vmatmul.bf16.gmra.mxu0 %v1020
    %v1230 = vpop.f32.mrf.mxu0
    %v1231 = vadd.f32 %v1134, %v1230
    %v1232 = vpop.f32.mrf.mxu0
    %v1233 = vadd.f32 %v1136, %v1232
    %1234 = vmatmul.bf16.gmra.mxu0 %v1021
    %v1235 = vpop.f32.mrf.mxu0
    %v1236 = vadd.f32 %v1139, %v1235
    %v1237 = vpop.f32.mrf.mxu0
    %v1238 = vadd.f32 %v1141, %v1237
    %1239 = vmatmul.bf16.gmra.mxu0 %v1022
    %v1240 = vpop.f32.mrf.mxu0
    %v1241 = vadd.f32 %v1144, %v1240
    %v1242 = vpop.f32.mrf.mxu0
    %v1243 = vadd.f32 %v1146, %v1242
    %1244 = vmatmul.bf16.gmra.mxu0 %v1023
    %v1245 = vpop.f32.mrf.mxu0
    %v1246 = vadd.f32 %v1149, %v1245
    %v1247 = vpop.f32.mrf.mxu0
    %v1248 = vadd.f32 %v1151, %v1247
    %1249 = vdwg.mxu0
    %v1250 = vld [vmem:[%s10] sm:$0x1]
    %v1252 = vperm.slane %v1250, 0
    %v1254 = vadd.f32 %v1211, %v1252
    %v1255 = vadd.f32 %v1213, %v1252
    %v1256 = vadd.f32 %v1216, %v1252
    %v1257 = vadd.f32 %v1218, %v1252
    %v1258 = vadd.f32 %v1221, %v1252
    %v1259 = vadd.f32 %v1223, %v1252
    %v1260 = vadd.f32 %v1226, %v1252
    %v1261 = vadd.f32 %v1228, %v1252
    %v1262 = vadd.f32 %v1231, %v1252
    %v1263 = vadd.f32 %v1233, %v1252
    %v1264 = vadd.f32 %v1236, %v1252
    %v1265 = vadd.f32 %v1238, %v1252
    %v1266 = vadd.f32 %v1241, %v1252
    %v1267 = vadd.f32 %v1243, %v1252
    %v1268 = vadd.f32 %v1246, %v1252
    %v1269 = vadd.f32 %v1248, %v1252
    %v1270 = vmax.f32 %v1254, 0.0
    %v1271 = vmax.f32 %v1255, 0.0
    %v1272 = vmax.f32 %v1256, 0.0
    %v1273 = vmax.f32 %v1257, 0.0
    %v1274 = vmax.f32 %v1258, 0.0
    %v1275 = vmax.f32 %v1259, 0.0
    %v1276 = vmax.f32 %v1260, 0.0
    %v1277 = vmax.f32 %v1261, 0.0
    %v1278 = vmax.f32 %v1262, 0.0
    %v1279 = vmax.f32 %v1263, 0.0
    %v1280 = vmax.f32 %v1264, 0.0
    %v1281 = vmax.f32 %v1265, 0.0
    %v1282 = vmax.f32 %v1266, 0.0
    %v1283 = vmax.f32 %v1267, 0.0
    %v1284 = vmax.f32 %v1268, 0.0
    %v1285 = vmax.f32 %v1269, 0.0
    %v1286 = vpack.c.bf16 %v1271, %v1270
    %v1287 = vpack.c.bf16 %v1273, %v1272
    %v1288 = vpack.c.bf16 %v1275, %v1274
    %v1289 = vpack.c.bf16 %v1277, %v1276
    %v1290 = vpack.c.bf16 %v1279, %v1278
    %v1291 = vpack.c.bf16 %v1281, %v1280
    %v1292 = vpack.c.bf16 %v1283, %v1282
    %v1293 = vpack.c.bf16 %v1285, %v1284
    %v1294 = vld [vmem:[#allocation16] sm:$0xf]
    %v1295 = vld [vmem:[#allocation16 + $0x4] sm:$0xf]
    %v1296 = vld [vmem:[#allocation16 + $0x8] sm:$0xf]
    %v1297 = vld [vmem:[#allocation16 + $0xc] sm:$0xf]
    %v1298 = vld [vmem:[#allocation16 + $0x10] sm:$0xf]
    %v1299 = vld [vmem:[#allocation16 + $0x14] sm:$0xf]
    %v1300 = vld [vmem:[#allocation16 + $0x18] sm:$0xf]
    %v1301 = vld [vmem:[#allocation16 + $0x1c] sm:$0xf]
    %v1302 = vld [vmem:[#allocation16 + $0x20] sm:$0xf]
    %v1303 = vld [vmem:[#allocation16 + $0x24] sm:$0xf]
    %v1304 = vld [vmem:[#allocation16 + $0x28] sm:$0xf]
    %v1305 = vld [vmem:[#allocation16 + $0x2c] sm:$0xf]
    %v1306 = vld [vmem:[#allocation16 + $0x30] sm:$0xf]
    %v1307 = vld [vmem:[#allocation16 + $0x34] sm:$0xf]
    %v1308 = vld [vmem:[#allocation16 + $0x38] sm:$0xf]
    %v1309 = vld [vmem:[#allocation16 + $0x3c] sm:$0xf]
    %v1310 = vld [vmem:[%s12] sm:$0x1]
    %v1312 = vperm.slane %v1310, 0
    %v1330 = vunpack.c.l.b16 %v1294
    %v1331 = vunpack.c.l.b16 %v1295
    %v1332 = vunpack.c.l.b16 %v1296
    %v1333 = vunpack.c.l.b16 %v1297
    %v1334 = vunpack.c.l.b16 %v1298
    %v1335 = vunpack.c.l.b16 %v1299
    %v1336 = vunpack.c.l.b16 %v1300
    %v1337 = vunpack.c.l.b16 %v1301
    %v1338 = vunpack.c.l.b16 %v1302
    %v1339 = vunpack.c.l.b16 %v1303
    %v1340 = vunpack.c.l.b16 %v1304
    %v1341 = vunpack.c.l.b16 %v1305
    %v1342 = vunpack.c.l.b16 %v1306
    %v1343 = vunpack.c.l.b16 %v1307
    %v1344 = vunpack.c.l.b16 %v1308
    %v1345 = vunpack.c.l.b16 %v1309
    %v1346 = vpack.c.b16 %v1331, %v1330
    %v1347 = vpack.c.b16 %v1333, %v1332
    %v1348 = vpack.c.b16 %v1335, %v1334
    %v1349 = vpack.c.b16 %v1337, %v1336
    %v1350 = vpack.c.b16 %v1339, %v1338
    %v1351 = vpack.c.b16 %v1341, %v1340
    %v1352 = vpack.c.b16 %v1343, %v1342
    %v1353 = vpack.c.b16 %v1345, %v1344
    %1362 = vmatpush.bf16.msra.mxu0 %v1353
    %1363 = vmatpush.bf16.msra.mxu0 %v1352
    %1364 = vmatpush.bf16.msra.mxu0 %v1351
    %1365 = vmatpush.bf16.msra.mxu0 %v1350
    %1366 = vmatpush.bf16.msra.mxu0 %v1349
    %1367 = vmatpush.bf16.msra.mxu0 %v1348
    %1368 = vmatpush.bf16.msra.mxu0 %v1347
    %1369 = vmatpush.bf16.msra.mxu0 %v1346
    %1370 = vmatmul.bf16.gmra.mxu0 %v1286
    %v1371 = vpop.f32.mrf.mxu0
    %v1372 = vadd.f32 %v1312, %v1371
    %v1373 = vpop.f32.mrf.mxu0
    %v1374 = vadd.f32 %v1312, %v1373
    %1375 = vmatmul.bf16.gmra.mxu0 %v1287
    %v1376 = vpop.f32.mrf.mxu0
    %v1377 = vadd.f32 %v1312, %v1376
    %v1378 = vpop.f32.mrf.mxu0
    %v1379 = vadd.f32 %v1312, %v1378
    %1380 = vmatmul.bf16.gmra.mxu0 %v1288
    %v1381 = vpop.f32.mrf.mxu0
    %v1382 = vadd.f32 %v1312, %v1381
    %v1383 = vpop.f32.mrf.mxu0
    %v1384 = vadd.f32 %v1312, %v1383
    %1385 = vmatmul.bf16.gmra.mxu0 %v1289
    %v1386 = vpop.f32.mrf.mxu0
    %v1387 = vadd.f32 %v1312, %v1386
    %v1388 = vpop.f32.mrf.mxu0
    %v1389 = vadd.f32 %v1312, %v1388
    %1390 = vmatmul.bf16.gmra.mxu0 %v1290
    %v1391 = vpop.f32.mrf.mxu0
    %v1392 = vadd.f32 %v1312, %v1391
    %v1393 = vpop.f32.mrf.mxu0
    %v1394 = vadd.f32 %v1312, %v1393
    %1395 = vmatmul.bf16.gmra.mxu0 %v1291
    %v1396 = vpop.f32.mrf.mxu0
    %v1397 = vadd.f32 %v1312, %v1396
    %v1398 = vpop.f32.mrf.mxu0
    %v1399 = vadd.f32 %v1312, %v1398
    %1400 = vmatmul.bf16.gmra.mxu0 %v1292
    %v1401 = vpop.f32.mrf.mxu0
    %v1402 = vadd.f32 %v1312, %v1401
    %v1403 = vpop.f32.mrf.mxu0
    %v1404 = vadd.f32 %v1312, %v1403
    %1405 = vmatmul.bf16.gmra.mxu0 %v1293
    %v1406 = vpop.f32.mrf.mxu0
    %v1407 = vadd.f32 %v1312, %v1406
    %v1408 = vpop.f32.mrf.mxu0
    %v1409 = vadd.f32 %v1312, %v1408
    %1410 = vdwg.mxu0
    %1411 = vst [vmem:[#allocation17] sm:$0xff] %v1372
    %1412 = vst [vmem:[#allocation17 + $0x8] sm:$0xff] %v1374
    %1413 = vst [vmem:[#allocation17 + $0x10] sm:$0xff] %v1377
    %1414 = vst [vmem:[#allocation17 + $0x18] sm:$0xff] %v1379
    %1415 = vst [vmem:[#allocation17 + $0x20] sm:$0xff] %v1382
    %1416 = vst [vmem:[#allocation17 + $0x28] sm:$0xff] %v1384
    %1417 = vst [vmem:[#allocation17 + $0x30] sm:$0xff] %v1387
    %1418 = vst [vmem:[#allocation17 + $0x38] sm:$0xff] %v1389
    %1419 = vst [vmem:[#allocation17 + $0x40] sm:$0xff] %v1392
    %1420 = vst [vmem:[#allocation17 + $0x48] sm:$0xff] %v1394
    %1421 = vst [vmem:[#allocation17 + $0x50] sm:$0xff] %v1397
    %1422 = vst [vmem:[#allocation17 + $0x58] sm:$0xff] %v1399
    %1423 = vst [vmem:[#allocation17 + $0x60] sm:$0xff] %v1402
    %1424 = vst [vmem:[#allocation17 + $0x68] sm:$0xff] %v1404
    %1425 = vst [vmem:[#allocation17 + $0x70] sm:$0xff] %v1407
    %1426 = vst [vmem:[#allocation17 + $0x78] sm:$0xff] %v1409
    // Predicated region
    $region90: #{graphsage_forward.1} parent=1 // pred_check
      _
    $region91: #{graphsage_forward.1} parent=1 // pred_check_branch
      %1428 = sbr.rel (0) target = $region93
    $region92: #{graphsage_forward.1} parent=1 // pred_region
      %1430 = vsyncadd [#allocation4], 0
      %s1431 = sshll.u32 [#allocation17], 4
      %s1432 = int_to_ptr.vmem [resolvable:$true] %s1431
      %s1433 = sshll.u32 %s13, 4
      %s1434 = int_to_ptr.hbm [resolvable:$true] %s1433
      %1439 = dma.vmem_to_hbm [thread:$0]  %s1432, 2048, %s1434, [#allocation4], 128, 128, 8
    $region93: #{graphsage_forward.1} parent=1 // pred_fallthru
      _
    // Predicated region
    $region94: #{graphsage_forward.1} parent=1 // pred_check
      _
    $region95: #{graphsage_forward.1} parent=1 // pred_check_branch
      %1441 = sbr.rel (0) target = $region97
    $region96: #{graphsage_forward.1} parent=1 // pred_region
      %1443 = dma.done [#allocation4], 2048
    $region97: #{graphsage_forward.1} parent=1 // pred_fallthru
      _
    %1444 = vsyncpa [#allocation3], 1
    %1445 = vsyncpa [#allocation6], 1
    %1446 = vsyncpa [#allocation9], 1
    %1447 = vsyncpa [#allocation12], 1
    %1448 = vsyncpa [#allocation15], 1
    %1449 = vsyncpa [#allocation4], 1

</llo_original>
